<compile_context>
chip_gen: v7x
topology: tpu7x:2x2x1
jax: 0.10.0
libtpu: 0.0.40
codegen_flags: <defaults>
</compile_context>

<pallas_src>
import jax
import jax.numpy as jnp
from jax import lax
from jax.experimental import pallas as pl
from jax.experimental.pallas import tpu as pltpu

# ----------------------- config (synthetic, small) -----------------------
B             = 2
T_Q           = 8        # question length
N_IMG         = 16       # image regions
WORD_EMBED    = 32       # __C.WORD_EMBED_SIZE
HIDDEN        = 32       # __C.HIDDEN_SIZE
IMG_FEAT      = 64       # __C.IMG_FEAT_SIZE
FLAT_MLP      = 32       # __C.FLAT_MLP_SIZE
FLAT_GLIMPSES = 1        # __C.FLAT_GLIMPSES
FLAT_OUT      = 64       # __C.FLAT_OUT_SIZE
ANSWER        = 8
TOKENS        = 50
NEG_INF       = -1000000000.0
LN_EPS        = 1e-6
LANES         = 128

VMEM = pltpu.MemorySpace.VMEM


# --------------------- packed parameter buffer layout ----------------------
def _pad8(r):
    return (r + 7) // 8 * 8

# (name, rows, cols) in the packed [PACK_ROWS, 128] fp32 buffer.
_LAYOUT = [
    ('emb',   TOKENS,      WORD_EMBED),     # embedding table
    ('wih',   WORD_EMBED,  4 * HIDDEN),     # LSTM input weights (transposed)
    ('whh',   HIDDEN,      4 * HIDDEN),     # LSTM recurrent weights (transposed)
    ('lstmb', 1,           4 * HIDDEN),     # b_ih + b_hh
    ('imgw',  IMG_FEAT,    HIDDEN),
    ('imgb',  1,           HIDDEN),
    ('w0',    HIDDEN,      2 * FLAT_MLP),   # [lang_w0 | img_w0]
    ('b0',    1,           2 * FLAT_MLP),   # [lang_b0 | img_b0]
    ('w1r',   1,           2 * FLAT_MLP),   # glimpse proj, transposed, [lang | img]
    ('b1',    1,           2),              # [lang_b1, img_b1]
    ('wm',    2 * HIDDEN,  FLAT_OUT),       # [lang_wm ; img_wm]
    ('bm',    1,           FLAT_OUT),       # lang_bm + img_bm
    ('lng',   1,           FLAT_OUT),
    ('lnb',   1,           FLAT_OUT),
    ('pw',    FLAT_OUT,    ANSWER),
    ('pb',    1,           ANSWER),
]
OFF = {}
_r = 0
for _n, _rows, _cols in _LAYOUT:
    OFF[_n] = _r
    _r += _pad8(_rows)
PACK_ROWS = _r   # 416


def pack_params(params):
    """Concatenate all parameters into one [PACK_ROWS, 128] fp32 buffer (1 DMA)."""
    afl = params['attflat_lang']
    afi = params['attflat_img']
    hd = params['head']
    tensors = {
        'emb':   params['embedding'],
        'wih':   params['lstm_wih'],
        'whh':   params['lstm_whh'],
        'lstmb': params['lstm_b'],
        'imgw':  params['img_w'],
        'imgb':  params['img_b'],
        'w0':    jnp.concatenate([afl['w0'], afi['w0']], axis=1),     # [32, 64]
        'b0':    jnp.concatenate([afl['b0'], afi['b0']], axis=1),     # [1, 64]
        'w1r':   jnp.concatenate([afl['w1r'], afi['w1r']], axis=1),   # [1, 64]
        'b1':    jnp.concatenate([afl['b1'], afi['b1']], axis=1),     # [1, 2]
        'wm':    jnp.concatenate([afl['wm'], afi['wm']], axis=0),     # [64, 64]
        'bm':    afl['bm'] + afi['bm'],                               # [1, 64] (exact fusion)
        'lng':   hd['ln_g'],
        'lnb':   hd['ln_b'],
        'pw':    hd['proj_w'],
        'pb':    hd['proj_b'],
    }
    blocks = []
    for name, rows, cols in _LAYOUT:
        a = tensors[name].astype(jnp.float32)
        assert a.shape == (rows, cols), (name, a.shape)
        blk = jnp.pad(a, ((0, _pad8(rows) - rows), (0, LANES - cols)))
        blocks.append(blk)
    return jnp.concatenate(blocks, axis=0)       # [PACK_ROWS, 128]


# ------------------------------ fused kernel ------------------------------
def net_kernel(ques_ref, img_ref, p_ref, o_ref):
    q = ques_ref[...]                                               # [B, T] int32
    img = img_ref[...]                                              # [B, N, F]

    # make_mask: (sum(|feature|, -1) == 0)
    lang_mask = (q == 0)                                            # [B, T] bool
    img_mask = (jnp.sum(jnp.abs(img), axis=-1) == 0.0)              # [B, N] bool

    # ---- embedding lookup as one-hot matmul (table resident in VMEM) ----
    emb_tbl = p_ref[OFF['emb']:OFF['emb'] + TOKENS, 0:WORD_EMBED]   # [V, E]
    tok = lax.broadcasted_iota(jnp.int32, (B, T_Q, TOKENS), 2)
    onehot = (tok == q[:, :, None]).astype(jnp.float32)             # [B, T, V]
    emb2 = jnp.dot(onehot.reshape(B * T_Q, TOKENS), emb_tbl,
                   preferred_element_type=jnp.float32)              # [B*T, E]

    # ---- LSTM (batch_first, h0=c0=0, PyTorch gate order i,f,g,o) ----
    wih = p_ref[OFF['wih']:OFF['wih'] + WORD_EMBED, :]              # [E, 4H]
    whh = p_ref[OFF['whh']:OFF['whh'] + HIDDEN, :]                  # [H, 4H]
    lstmb = p_ref[OFF['lstmb']:OFF['lstmb'] + 1, :]                 # [1, 4H]
    # Input projection hoisted out of the recurrence (one batched matmul).
    xw = (jnp.dot(emb2, wih, preferred_element_type=jnp.float32)
          + lstmb).reshape(B, T_Q, 4 * HIDDEN)                      # [B, T, 4H]

    h = jnp.zeros((B, HIDDEN), jnp.float32)
    c = jnp.zeros((B, HIDDEN), jnp.float32)
    hs = []                                                         # register-resident history
    for t in range(T_Q):                                            # static full unroll (T=8)
        z = xw[:, t, :] + jnp.dot(h, whh, preferred_element_type=jnp.float32)  # [B, 4H]
        # 2 EUP pushes per step: full-vreg sigmoid and tanh, slice gates after.
        s_all = jax.nn.sigmoid(z)
        t_all = jnp.tanh(z)
        i_g = s_all[:, 0:HIDDEN]
        f_g = s_all[:, HIDDEN:2 * HIDDEN]
        g_g = t_all[:, 2 * HIDDEN:3 * HIDDEN]
        o_g = s_all[:, 3 * HIDDEN:4 * HIDDEN]
        c = f_g * c + i_g * g_g
        h = o_g * jnp.tanh(c)
        hs.append(h)
    lang_feat = jnp.stack(hs, axis=1)                               # [B, T, H]

    # ---- image feature linear ----
    img_w = p_ref[OFF['imgw']:OFF['imgw'] + IMG_FEAT, 0:HIDDEN]     # [F, H]
    img_b = p_ref[OFF['imgb']:OFF['imgb'] + 1, 0:HIDDEN]            # [1, H]
    img_h = (jnp.dot(img.reshape(B * N_IMG, IMG_FEAT), img_w,
                     preferred_element_type=jnp.float32)
             + img_b).reshape(B, N_IMG, HIDDEN)                     # [B, N, H]

    # ---- fused AttFlat first layer: one [48,32] x [32,64] matmul ----
    lang2 = lang_feat.reshape(B * T_Q, HIDDEN)                      # [16, 32]
    img2 = img_h.reshape(B * N_IMG, HIDDEN)                         # [32, 32]
    rows = jnp.concatenate([lang2, img2], axis=0)                   # [48, 32]
    w0_cat = p_ref[OFF['w0']:OFF['w0'] + HIDDEN, 0:2 * FLAT_MLP]    # [32, 64]
    b0_cat = p_ref[OFF['b0']:OFF['b0'] + 1, 0:2 * FLAT_MLP]         # [1, 64]
    hh = jnp.maximum(jnp.dot(rows, w0_cat,
                             preferred_element_type=jnp.float32) + b0_cat, 0.0)  # [48, 64]
    h_lang = hh[0:B * T_Q, 0:FLAT_MLP].reshape(B, T_Q, FLAT_MLP)    # diag block (exact)
    h_img = hh[B * T_Q:B * T_Q + B * N_IMG,
               FLAT_MLP:2 * FLAT_MLP].reshape(B, N_IMG, FLAT_MLP)   # diag block (exact)

    # ---- glimpse scores (FLAT_GLIMPSES == 1): VPU multiply + lane reduce ----
    w1r_cat = p_ref[OFF['w1r']:OFF['w1r'] + 1, 0:2 * FLAT_MLP]      # [1, 64]
    b1_cat = p_ref[OFF['b1']:OFF['b1'] + 1, 0:2]                    # [1, 2]

    def _masked_softmax_pool(h3, mask, w1r, b1, x):
        att = jnp.sum(h3 * w1r[None, :, :], axis=-1) + b1           # [B, n]
        att = jnp.where(mask, NEG_INF, att)                         # masked_fill(-1e9)
        att = att - jnp.max(att, axis=-1, keepdims=True)
        p = jnp.exp(att)
        p = p * pl.reciprocal(jnp.sum(p, axis=-1, keepdims=True), approx=True)
        return jnp.sum(p[:, :, None] * x, axis=1)                   # [B, H]

    pooled_lang = _masked_softmax_pool(h_lang, lang_mask,
                                       w1r_cat[:, 0:FLAT_MLP],
                                       b1_cat[:, 0:1], lang_feat)   # [B, H]
    pooled_img = _masked_softmax_pool(h_img, img_mask,
                                      w1r_cat[:, FLAT_MLP:2 * FLAT_MLP],
                                      b1_cat[:, 1:2], img_h)        # [B, H]

    # ---- fused merge projections: [B,64] x [64,64] == lang_vec + img_vec ----
    pooled_cat = jnp.concatenate([pooled_lang, pooled_img], axis=1)  # [B, 2H]
    wm_cat = p_ref[OFF['wm']:OFF['wm'] + 2 * HIDDEN, 0:FLAT_OUT]     # [2H, FLAT_OUT]
    bm_sum = p_ref[OFF['bm']:OFF['bm'] + 1, 0:FLAT_OUT]              # [1, FLAT_OUT]
    x = jnp.dot(pooled_cat, wm_cat, preferred_element_type=jnp.float32) + bm_sum  # [B, FLAT_OUT]

    # ---- head: sigmoid( LayerNorm(lang + img) @ Wp + bp ) ----
    ln_g = p_ref[OFF['lng']:OFF['lng'] + 1, 0:FLAT_OUT]
    ln_b = p_ref[OFF['lnb']:OFF['lnb'] + 1, 0:FLAT_OUT]
    proj_w = p_ref[OFF['pw']:OFF['pw'] + FLAT_OUT, 0:ANSWER]
    proj_b = p_ref[OFF['pb']:OFF['pb'] + 1, 0:ANSWER]

    mu = jnp.mean(x, axis=-1, keepdims=True)
    var = jnp.mean((x - mu) ** 2, axis=-1, keepdims=True)
    y = (x - mu) * lax.rsqrt(var + LN_EPS) * ln_g + ln_b
    logits = jnp.dot(y, proj_w, preferred_element_type=jnp.float32) + proj_b
    o_ref[...] = jax.nn.sigmoid(logits).astype(o_ref.dtype)


# ----------------------------- Net forward --------------------------------
def net_forward(packed_params, img_feat, ques_ix):
    return pl.pallas_call(
        net_kernel,
        out_shape=jax.ShapeDtypeStruct((B, ANSWER), jnp.float32),
        in_specs=[pl.BlockSpec(memory_space=VMEM),    # ques_ix
                  pl.BlockSpec(memory_space=VMEM),    # img_feat
                  pl.BlockSpec(memory_space=VMEM)],   # packed params (1 DMA)
        out_specs=pl.BlockSpec(memory_space=VMEM),
    )(ques_ix, img_feat, packed_params)


# --------------------------- parameter init --------------------------------
def init_params(key):
    def dense(k, fan_in, fan_out):
        k1, k2 = jax.random.split(k)
        lim = 1.0 / jnp.sqrt(jnp.float32(fan_in))
        w_t = jax.random.uniform(k1, (fan_in, fan_out), jnp.float32, -lim, lim)
        b = jax.random.uniform(k2, (1, fan_out), jnp.float32, -lim, lim)
        return w_t, b

    keys = jax.random.split(key, 10)
    params = {}
    params['embedding'] = 0.1 * jax.random.normal(keys[0], (TOKENS, WORD_EMBED), jnp.float32)

    lim = 1.0 / jnp.sqrt(jnp.float32(HIDDEN))
    params['lstm_wih'] = jax.random.uniform(keys[1], (WORD_EMBED, 4 * HIDDEN), jnp.float32, -lim, lim)
    params['lstm_whh'] = jax.random.uniform(keys[2], (HIDDEN, 4 * HIDDEN), jnp.float32, -lim, lim)
    kb1, kb2 = jax.random.split(keys[3])
    # faithful to PyTorch: b = b_ih + b_hh (two independent uniforms folded)
    params['lstm_b'] = (jax.random.uniform(kb1, (1, 4 * HIDDEN), jnp.float32, -lim, lim)
                        + jax.random.uniform(kb2, (1, 4 * HIDDEN), jnp.float32, -lim, lim))

    params['img_w'], params['img_b'] = dense(keys[4], IMG_FEAT, HIDDEN)

    def attflat_params(k):
        ks = jax.random.split(k, 3)
        w0, b0 = dense(ks[0], HIDDEN, FLAT_MLP)
        w1, b1 = dense(ks[1], FLAT_MLP, FLAT_GLIMPSES)
        wm, bm = dense(ks[2], HIDDEN * FLAT_GLIMPSES, FLAT_OUT)
        # store the glimpse projection transposed ([1, FLAT_MLP]) for the in-kernel VPU reduce
        return dict(w0=w0, b0=b0, w1r=jnp.transpose(w1), b1=b1, wm=wm, bm=bm)

    params['attflat_lang'] = attflat_params(keys[5])
    params['attflat_img'] = attflat_params(keys[6])

    proj_w, proj_b = dense(keys[7], FLAT_OUT, ANSWER)
    params['head'] = dict(
        ln_g=jnp.ones((1, FLAT_OUT), jnp.float32),
        ln_b=jnp.zeros((1, FLAT_OUT), jnp.float32),
        proj_w=proj_w, proj_b=proj_b,
    )
    return params


# --------------------------------- main -------------------------------------
if __name__ == "__main__":
    key = jax.random.PRNGKey(0)
    kp, kimg = jax.random.split(key)
    params = init_params(kp)
    packed = jax.block_until_ready(pack_params(params))   # host-side one-time packing

    img_feat = jax.random.normal(kimg, (B, N_IMG, IMG_FEAT), jnp.float32)
    img_feat = img_feat.at[1, -4:, :].set(0.0)       # padded image regions for batch 1
    ques_ix = jnp.array([[3, 7, 2, 5, 11, 0, 0, 0],
                         [1, 4, 9, 0, 0, 0, 0, 0]], dtype=jnp.int32)  # 0 = pad token

    out = jax.jit(net_forward)(packed, img_feat, ques_ix)
    out = jax.block_until_ready(out)

    assert out.shape == (B, ANSWER), out.shape
    assert bool(jnp.all(jnp.isfinite(out)))
    assert bool(jnp.all((out >= 0.0) & (out <= 1.0)))   # sigmoid output range
    print("KERNEL_OK")
</pallas_src>

<mosaic_0001>
module attributes {stable_mosaic.version = 11 : i64} {
  func.func @net_kernel(%arg0: memref<2x8xi32, #tpu.memory_space<vmem>>, %arg1: memref<2x16x64xf32, #tpu.memory_space<vmem>>, %arg2: memref<416x128xf32, #tpu.memory_space<vmem>>, %arg3: memref<2x8xf32, #tpu.memory_space<vmem>>) attributes {dimension_semantics = [], scalar_prefetch = 0 : i64, scratch_operands = 0 : i64, tpu.core_type = #tpu.core_type<tc>} {
    %c0 = arith.constant 0 : index
    %c0_0 = arith.constant 0 : index
    %0 = vector.load %arg0[%c0, %c0_0] : memref<2x8xi32, #tpu.memory_space<vmem>>, vector<2x8xi32>
    %c0_1 = arith.constant 0 : index
    %c0_2 = arith.constant 0 : index
    %c0_3 = arith.constant 0 : index
    %1 = vector.load %arg1[%c0_1, %c0_2, %c0_3] : memref<2x16x64xf32, #tpu.memory_space<vmem>>, vector<2x16x64xf32>
    %c0_i32 = arith.constant 0 : i32
    %2 = vector.broadcast %c0_i32 : i32 to vector<2x8xi32>
    %3 = arith.cmpi eq, %0, %2 : vector<2x8xi32>
    %4 = math.absf %1 : vector<2x16x64xf32>
    %cst = arith.constant dense<0.000000e+00> : vector<2x16xf32>
    %5 = vector.multi_reduction <add>, %4, %cst [2] : vector<2x16x64xf32> to vector<2x16xf32>
    %cst_4 = arith.constant 0.000000e+00 : f32
    %6 = vector.broadcast %cst_4 : f32 to vector<2x16xf32>
    %7 = arith.cmpf oeq, %5, %6 : vector<2x16xf32>
    %c0_5 = arith.constant 0 : index
    %c0_6 = arith.constant 0 : index
    %8 = vector.load %arg2[%c0_5, %c0_6] : memref<416x128xf32, #tpu.memory_space<vmem>>, vector<50x32xf32>
    %9 = tpu.iota {dimensions = array<i32: 2>} : vector<2x8x50xi32>
    %10 = vector.shape_cast %0 : vector<2x8xi32> to vector<2x8x1xi32>
    %11 = vector.broadcast %10 : vector<2x8x1xi32> to vector<2x8x50xi32>
    %12 = arith.cmpi eq, %9, %11 : vector<2x8x50xi32>
    %13 = arith.extui %12 : vector<2x8x50xi1> to vector<2x8x50xi32>
    %14 = arith.sitofp %13 : vector<2x8x50xi32> to vector<2x8x50xf32>
    %15 = vector.shape_cast %14 : vector<2x8x50xf32> to vector<16x50xf32>
    %cst_7 = arith.constant dense<0.000000e+00> : vector<16x32xf32>
    %16 = tpu.matmul %15, %8, %cst_7 {dimension_numbers = #tpu.dot_dimension_numbers<[1], [0], [0], [1], [0, 0, 1, 1], [], []>} : vector<16x50xf32>, vector<50x32xf32>, vector<16x32xf32> -> vector<16x32xf32>
    %c56 = arith.constant 56 : index
    %c0_8 = arith.constant 0 : index
    %17 = vector.load %arg2[%c56, %c0_8] : memref<416x128xf32, #tpu.memory_space<vmem>>, vector<32x128xf32>
    %c88 = arith.constant 88 : index
    %c0_9 = arith.constant 0 : index
    %18 = vector.load %arg2[%c88, %c0_9] : memref<416x128xf32, #tpu.memory_space<vmem>>, vector<32x128xf32>
    %c120 = arith.constant 120 : index
    %c0_10 = arith.constant 0 : index
    %19 = vector.load %arg2[%c120, %c0_10] : memref<416x128xf32, #tpu.memory_space<vmem>>, vector<1x128xf32>
    %cst_11 = arith.constant dense<0.000000e+00> : vector<16x128xf32>
    %20 = tpu.matmul %16, %17, %cst_11 {dimension_numbers = #tpu.dot_dimension_numbers<[1], [0], [0], [1], [0, 0, 1, 1], [], []>} : vector<16x32xf32>, vector<32x128xf32>, vector<16x128xf32> -> vector<16x128xf32>
    %21 = vector.broadcast %19 : vector<1x128xf32> to vector<16x128xf32>
    %22 = arith.addf %20, %21 : vector<16x128xf32>
    %23 = vector.shape_cast %22 : vector<16x128xf32> to vector<2x8x128xf32>
    %cst_12 = arith.constant 0.000000e+00 : f32
    %24 = vector.broadcast %cst_12 : f32 to vector<2x32xf32>
    %cst_13 = arith.constant 0.000000e+00 : f32
    %25 = vector.broadcast %cst_13 : f32 to vector<2x32xf32>
    %26 = vector.extract_strided_slice %23 {offsets = [0, 0, 0], sizes = [2, 1, 128], strides = [1, 1, 1]} : vector<2x8x128xf32> to vector<2x1x128xf32>
    %27 = vector.shape_cast %26 : vector<2x1x128xf32> to vector<2x128xf32>
    %cst_14 = arith.constant dense<0.000000e+00> : vector<2x128xf32>
    %28 = tpu.matmul %24, %18, %cst_14 {dimension_numbers = #tpu.dot_dimension_numbers<[1], [0], [0], [1], [0, 0, 1, 1], [], []>} : vector<2x32xf32>, vector<32x128xf32>, vector<2x128xf32> -> vector<2x128xf32>
    %29 = arith.addf %27, %28 : vector<2x128xf32>
    %30 = arith.negf %29 : vector<2x128xf32>
    %31 = math.exp %30 : vector<2x128xf32>
    %cst_15 = arith.constant 1.000000e+00 : f32
    %32 = vector.broadcast %cst_15 : f32 to vector<2x128xf32>
    %33 = arith.addf %32, %31 : vector<2x128xf32>
    %34 = arith.divf %32, %33 : vector<2x128xf32>
    %35 = math.tanh %29 : vector<2x128xf32>
    %36 = vector.extract_strided_slice %34 {offsets = [0, 0], sizes = [2, 32], strides = [1, 1]} : vector<2x128xf32> to vector<2x32xf32>
    %37 = vector.extract_strided_slice %34 {offsets = [0, 32], sizes = [2, 32], strides = [1, 1]} : vector<2x128xf32> to vector<2x32xf32>
    %38 = vector.extract_strided_slice %35 {offsets = [0, 64], sizes = [2, 32], strides = [1, 1]} : vector<2x128xf32> to vector<2x32xf32>
    %39 = vector.extract_strided_slice %34 {offsets = [0, 96], sizes = [2, 32], strides = [1, 1]} : vector<2x128xf32> to vector<2x32xf32>
    %40 = arith.mulf %37, %25 : vector<2x32xf32>
    %41 = arith.mulf %36, %38 : vector<2x32xf32>
    %42 = arith.addf %40, %41 : vector<2x32xf32>
    %43 = math.tanh %42 : vector<2x32xf32>
    %44 = arith.mulf %39, %43 : vector<2x32xf32>
    %45 = vector.extract_strided_slice %23 {offsets = [0, 1, 0], sizes = [2, 1, 128], strides = [1, 1, 1]} : vector<2x8x128xf32> to vector<2x1x128xf32>
    %46 = vector.shape_cast %45 : vector<2x1x128xf32> to vector<2x128xf32>
    %cst_16 = arith.constant dense<0.000000e+00> : vector<2x128xf32>
    %47 = tpu.matmul %44, %18, %cst_16 {dimension_numbers = #tpu.dot_dimension_numbers<[1], [0], [0], [1], [0, 0, 1, 1], [], []>} : vector<2x32xf32>, vector<32x128xf32>, vector<2x128xf32> -> vector<2x128xf32>
    %48 = arith.addf %46, %47 : vector<2x128xf32>
    %49 = arith.negf %48 : vector<2x128xf32>
    %50 = math.exp %49 : vector<2x128xf32>
    %cst_17 = arith.constant 1.000000e+00 : f32
    %51 = vector.broadcast %cst_17 : f32 to vector<2x128xf32>
    %52 = arith.addf %51, %50 : vector<2x128xf32>
    %53 = arith.divf %51, %52 : vector<2x128xf32>
    %54 = math.tanh %48 : vector<2x128xf32>
    %55 = vector.extract_strided_slice %53 {offsets = [0, 0], sizes = [2, 32], strides = [1, 1]} : vector<2x128xf32> to vector<2x32xf32>
    %56 = vector.extract_strided_slice %53 {offsets = [0, 32], sizes = [2, 32], strides = [1, 1]} : vector<2x128xf32> to vector<2x32xf32>
    %57 = vector.extract_strided_slice %54 {offsets = [0, 64], sizes = [2, 32], strides = [1, 1]} : vector<2x128xf32> to vector<2x32xf32>
    %58 = vector.extract_strided_slice %53 {offsets = [0, 96], sizes = [2, 32], strides = [1, 1]} : vector<2x128xf32> to vector<2x32xf32>
    %59 = arith.mulf %56, %42 : vector<2x32xf32>
    %60 = arith.mulf %55, %57 : vector<2x32xf32>
    %61 = arith.addf %59, %60 : vector<2x32xf32>
    %62 = math.tanh %61 : vector<2x32xf32>
    %63 = arith.mulf %58, %62 : vector<2x32xf32>
    %64 = vector.extract_strided_slice %23 {offsets = [0, 2, 0], sizes = [2, 1, 128], strides = [1, 1, 1]} : vector<2x8x128xf32> to vector<2x1x128xf32>
    %65 = vector.shape_cast %64 : vector<2x1x128xf32> to vector<2x128xf32>
    %cst_18 = arith.constant dense<0.000000e+00> : vector<2x128xf32>
    %66 = tpu.matmul %63, %18, %cst_18 {dimension_numbers = #tpu.dot_dimension_numbers<[1], [0], [0], [1], [0, 0, 1, 1], [], []>} : vector<2x32xf32>, vector<32x128xf32>, vector<2x128xf32> -> vector<2x128xf32>
    %67 = arith.addf %65, %66 : vector<2x128xf32>
    %68 = arith.negf %67 : vector<2x128xf32>
    %69 = math.exp %68 : vector<2x128xf32>
    %cst_19 = arith.constant 1.000000e+00 : f32
    %70 = vector.broadcast %cst_19 : f32 to vector<2x128xf32>
    %71 = arith.addf %70, %69 : vector<2x128xf32>
    %72 = arith.divf %70, %71 : vector<2x128xf32>
    %73 = math.tanh %67 : vector<2x128xf32>
    %74 = vector.extract_strided_slice %72 {offsets = [0, 0], sizes = [2, 32], strides = [1, 1]} : vector<2x128xf32> to vector<2x32xf32>
    %75 = vector.extract_strided_slice %72 {offsets = [0, 32], sizes = [2, 32], strides = [1, 1]} : vector<2x128xf32> to vector<2x32xf32>
    %76 = vector.extract_strided_slice %73 {offsets = [0, 64], sizes = [2, 32], strides = [1, 1]} : vector<2x128xf32> to vector<2x32xf32>
    %77 = vector.extract_strided_slice %72 {offsets = [0, 96], sizes = [2, 32], strides = [1, 1]} : vector<2x128xf32> to vector<2x32xf32>
    %78 = arith.mulf %75, %61 : vector<2x32xf32>
    %79 = arith.mulf %74, %76 : vector<2x32xf32>
    %80 = arith.addf %78, %79 : vector<2x32xf32>
    %81 = math.tanh %80 : vector<2x32xf32>
    %82 = arith.mulf %77, %81 : vector<2x32xf32>
    %83 = vector.extract_strided_slice %23 {offsets = [0, 3, 0], sizes = [2, 1, 128], strides = [1, 1, 1]} : vector<2x8x128xf32> to vector<2x1x128xf32>
    %84 = vector.shape_cast %83 : vector<2x1x128xf32> to vector<2x128xf32>
    %cst_20 = arith.constant dense<0.000000e+00> : vector<2x128xf32>
    %85 = tpu.matmul %82, %18, %cst_20 {dimension_numbers = #tpu.dot_dimension_numbers<[1], [0], [0], [1], [0, 0, 1, 1], [], []>} : vector<2x32xf32>, vector<32x128xf32>, vector<2x128xf32> -> vector<2x128xf32>
    %86 = arith.addf %84, %85 : vector<2x128xf32>
    %87 = arith.negf %86 : vector<2x128xf32>
    %88 = math.exp %87 : vector<2x128xf32>
    %cst_21 = arith.constant 1.000000e+00 : f32
    %89 = vector.broadcast %cst_21 : f32 to vector<2x128xf32>
    %90 = arith.addf %89, %88 : vector<2x128xf32>
    %91 = arith.divf %89, %90 : vector<2x128xf32>
    %92 = math.tanh %86 : vector<2x128xf32>
    %93 = vector.extract_strided_slice %91 {offsets = [0, 0], sizes = [2, 32], strides = [1, 1]} : vector<2x128xf32> to vector<2x32xf32>
    %94 = vector.extract_strided_slice %91 {offsets = [0, 32], sizes = [2, 32], strides = [1, 1]} : vector<2x128xf32> to vector<2x32xf32>
    %95 = vector.extract_strided_slice %92 {offsets = [0, 64], sizes = [2, 32], strides = [1, 1]} : vector<2x128xf32> to vector<2x32xf32>
    %96 = vector.extract_strided_slice %91 {offsets = [0, 96], sizes = [2, 32], strides = [1, 1]} : vector<2x128xf32> to vector<2x32xf32>
    %97 = arith.mulf %94, %80 : vector<2x32xf32>
    %98 = arith.mulf %93, %95 : vector<2x32xf32>
    %99 = arith.addf %97, %98 : vector<2x32xf32>
    %100 = math.tanh %99 : vector<2x32xf32>
    %101 = arith.mulf %96, %100 : vector<2x32xf32>
    %102 = vector.extract_strided_slice %23 {offsets = [0, 4, 0], sizes = [2, 1, 128], strides = [1, 1, 1]} : vector<2x8x128xf32> to vector<2x1x128xf32>
    %103 = vector.shape_cast %102 : vector<2x1x128xf32> to vector<2x128xf32>
    %cst_22 = arith.constant dense<0.000000e+00> : vector<2x128xf32>
    %104 = tpu.matmul %101, %18, %cst_22 {dimension_numbers = #tpu.dot_dimension_numbers<[1], [0], [0], [1], [0, 0, 1, 1], [], []>} : vector<2x32xf32>, vector<32x128xf32>, vector<2x128xf32> -> vector<2x128xf32>
    %105 = arith.addf %103, %104 : vector<2x128xf32>
    %106 = arith.negf %105 : vector<2x128xf32>
    %107 = math.exp %106 : vector<2x128xf32>
    %cst_23 = arith.constant 1.000000e+00 : f32
    %108 = vector.broadcast %cst_23 : f32 to vector<2x128xf32>
    %109 = arith.addf %108, %107 : vector<2x128xf32>
    %110 = arith.divf %108, %109 : vector<2x128xf32>
    %111 = math.tanh %105 : vector<2x128xf32>
    %112 = vector.extract_strided_slice %110 {offsets = [0, 0], sizes = [2, 32], strides = [1, 1]} : vector<2x128xf32> to vector<2x32xf32>
    %113 = vector.extract_strided_slice %110 {offsets = [0, 32], sizes = [2, 32], strides = [1, 1]} : vector<2x128xf32> to vector<2x32xf32>
    %114 = vector.extract_strided_slice %111 {offsets = [0, 64], sizes = [2, 32], strides = [1, 1]} : vector<2x128xf32> to vector<2x32xf32>
    %115 = vector.extract_strided_slice %110 {offsets = [0, 96], sizes = [2, 32], strides = [1, 1]} : vector<2x128xf32> to vector<2x32xf32>
    %116 = arith.mulf %113, %99 : vector<2x32xf32>
    %117 = arith.mulf %112, %114 : vector<2x32xf32>
    %118 = arith.addf %116, %117 : vector<2x32xf32>
    %119 = math.tanh %118 : vector<2x32xf32>
    %120 = arith.mulf %115, %119 : vector<2x32xf32>
    %121 = vector.extract_strided_slice %23 {offsets = [0, 5, 0], sizes = [2, 1, 128], strides = [1, 1, 1]} : vector<2x8x128xf32> to vector<2x1x128xf32>
    %122 = vector.shape_cast %121 : vector<2x1x128xf32> to vector<2x128xf32>
    %cst_24 = arith.constant dense<0.000000e+00> : vector<2x128xf32>
    %123 = tpu.matmul %120, %18, %cst_24 {dimension_numbers = #tpu.dot_dimension_numbers<[1], [0], [0], [1], [0, 0, 1, 1], [], []>} : vector<2x32xf32>, vector<32x128xf32>, vector<2x128xf32> -> vector<2x128xf32>
    %124 = arith.addf %122, %123 : vector<2x128xf32>
    %125 = arith.negf %124 : vector<2x128xf32>
    %126 = math.exp %125 : vector<2x128xf32>
    %cst_25 = arith.constant 1.000000e+00 : f32
    %127 = vector.broadcast %cst_25 : f32 to vector<2x128xf32>
    %128 = arith.addf %127, %126 : vector<2x128xf32>
    %129 = arith.divf %127, %128 : vector<2x128xf32>
    %130 = math.tanh %124 : vector<2x128xf32>
    %131 = vector.extract_strided_slice %129 {offsets = [0, 0], sizes = [2, 32], strides = [1, 1]} : vector<2x128xf32> to vector<2x32xf32>
    %132 = vector.extract_strided_slice %129 {offsets = [0, 32], sizes = [2, 32], strides = [1, 1]} : vector<2x128xf32> to vector<2x32xf32>
    %133 = vector.extract_strided_slice %130 {offsets = [0, 64], sizes = [2, 32], strides = [1, 1]} : vector<2x128xf32> to vector<2x32xf32>
    %134 = vector.extract_strided_slice %129 {offsets = [0, 96], sizes = [2, 32], strides = [1, 1]} : vector<2x128xf32> to vector<2x32xf32>
    %135 = arith.mulf %132, %118 : vector<2x32xf32>
    %136 = arith.mulf %131, %133 : vector<2x32xf32>
    %137 = arith.addf %135, %136 : vector<2x32xf32>
    %138 = math.tanh %137 : vector<2x32xf32>
    %139 = arith.mulf %134, %138 : vector<2x32xf32>
    %140 = vector.extract_strided_slice %23 {offsets = [0, 6, 0], sizes = [2, 1, 128], strides = [1, 1, 1]} : vector<2x8x128xf32> to vector<2x1x128xf32>
    %141 = vector.shape_cast %140 : vector<2x1x128xf32> to vector<2x128xf32>
    %cst_26 = arith.constant dense<0.000000e+00> : vector<2x128xf32>
    %142 = tpu.matmul %139, %18, %cst_26 {dimension_numbers = #tpu.dot_dimension_numbers<[1], [0], [0], [1], [0, 0, 1, 1], [], []>} : vector<2x32xf32>, vector<32x128xf32>, vector<2x128xf32> -> vector<2x128xf32>
    %143 = arith.addf %141, %142 : vector<2x128xf32>
    %144 = arith.negf %143 : vector<2x128xf32>
    %145 = math.exp %144 : vector<2x128xf32>
    %cst_27 = arith.constant 1.000000e+00 : f32
    %146 = vector.broadcast %cst_27 : f32 to vector<2x128xf32>
    %147 = arith.addf %146, %145 : vector<2x128xf32>
    %148 = arith.divf %146, %147 : vector<2x128xf32>
    %149 = math.tanh %143 : vector<2x128xf32>
    %150 = vector.extract_strided_slice %148 {offsets = [0, 0], sizes = [2, 32], strides = [1, 1]} : vector<2x128xf32> to vector<2x32xf32>
    %151 = vector.extract_strided_slice %148 {offsets = [0, 32], sizes = [2, 32], strides = [1, 1]} : vector<2x128xf32> to vector<2x32xf32>
    %152 = vector.extract_strided_slice %149 {offsets = [0, 64], sizes = [2, 32], strides = [1, 1]} : vector<2x128xf32> to vector<2x32xf32>
    %153 = vector.extract_strided_slice %148 {offsets = [0, 96], sizes = [2, 32], strides = [1, 1]} : vector<2x128xf32> to vector<2x32xf32>
    %154 = arith.mulf %151, %137 : vector<2x32xf32>
    %155 = arith.mulf %150, %152 : vector<2x32xf32>
    %156 = arith.addf %154, %155 : vector<2x32xf32>
    %157 = math.tanh %156 : vector<2x32xf32>
    %158 = arith.mulf %153, %157 : vector<2x32xf32>
    %159 = vector.extract_strided_slice %23 {offsets = [0, 7, 0], sizes = [2, 1, 128], strides = [1, 1, 1]} : vector<2x8x128xf32> to vector<2x1x128xf32>
    %160 = vector.shape_cast %159 : vector<2x1x128xf32> to vector<2x128xf32>
    %cst_28 = arith.constant dense<0.000000e+00> : vector<2x128xf32>
    %161 = tpu.matmul %158, %18, %cst_28 {dimension_numbers = #tpu.dot_dimension_numbers<[1], [0], [0], [1], [0, 0, 1, 1], [], []>} : vector<2x32xf32>, vector<32x128xf32>, vector<2x128xf32> -> vector<2x128xf32>
    %162 = arith.addf %160, %161 : vector<2x128xf32>
    %163 = arith.negf %162 : vector<2x128xf32>
    %164 = math.exp %163 : vector<2x128xf32>
    %cst_29 = arith.constant 1.000000e+00 : f32
    %165 = vector.broadcast %cst_29 : f32 to vector<2x128xf32>
    %166 = arith.addf %165, %164 : vector<2x128xf32>
    %167 = arith.divf %165, %166 : vector<2x128xf32>
    %168 = math.tanh %162 : vector<2x128xf32>
    %169 = vector.extract_strided_slice %167 {offsets = [0, 0], sizes = [2, 32], strides = [1, 1]} : vector<2x128xf32> to vector<2x32xf32>
    %170 = vector.extract_strided_slice %167 {offsets = [0, 32], sizes = [2, 32], strides = [1, 1]} : vector<2x128xf32> to vector<2x32xf32>
    %171 = vector.extract_strided_slice %168 {offsets = [0, 64], sizes = [2, 32], strides = [1, 1]} : vector<2x128xf32> to vector<2x32xf32>
    %172 = vector.extract_strided_slice %167 {offsets = [0, 96], sizes = [2, 32], strides = [1, 1]} : vector<2x128xf32> to vector<2x32xf32>
    %173 = arith.mulf %170, %156 : vector<2x32xf32>
    %174 = arith.mulf %169, %171 : vector<2x32xf32>
    %175 = arith.addf %173, %174 : vector<2x32xf32>
    %176 = math.tanh %175 : vector<2x32xf32>
    %177 = arith.mulf %172, %176 : vector<2x32xf32>
    %178 = vector.shape_cast %44 : vector<2x32xf32> to vector<2x1x32xf32>
    %179 = vector.shape_cast %63 : vector<2x32xf32> to vector<2x1x32xf32>
    %180 = vector.shape_cast %82 : vector<2x32xf32> to vector<2x1x32xf32>
    %181 = vector.shape_cast %101 : vector<2x32xf32> to vector<2x1x32xf32>
    %182 = vector.shape_cast %120 : vector<2x32xf32> to vector<2x1x32xf32>
    %183 = vector.shape_cast %139 : vector<2x32xf32> to vector<2x1x32xf32>
    %184 = vector.shape_cast %158 : vector<2x32xf32> to vector<2x1x32xf32>
    %185 = vector.shape_cast %177 : vector<2x32xf32> to vector<2x1x32xf32>
    %186 = tpu.concatenate %178, %179, %180, %181, %182, %183, %184, %185 in 1 : vector<2x1x32xf32>, vector<2x1x32xf32>, vector<2x1x32xf32>, vector<2x1x32xf32>, vector<2x1x32xf32>, vector<2x1x32xf32>, vector<2x1x32xf32>, vector<2x1x32xf32> -> vector<2x8x32xf32>
    %c128 = arith.constant 128 : index
    %c0_30 = arith.constant 0 : index
    %187 = vector.load %arg2[%c128, %c0_30] : memref<416x128xf32, #tpu.memory_space<vmem>>, vector<64x32xf32>
    %c192 = arith.constant 192 : index
    %c0_31 = arith.constant 0 : index
    %188 = vector.load %arg2[%c192, %c0_31] : memref<416x128xf32, #tpu.memory_space<vmem>>, vector<1x32xf32>
    %189 = vector.shape_cast %1 : vector<2x16x64xf32> to vector<32x64xf32>
    %cst_32 = arith.constant dense<0.000000e+00> : vector<32x32xf32>
    %190 = tpu.matmul %189, %187, %cst_32 {dimension_numbers = #tpu.dot_dimension_numbers<[1], [0], [0], [1], [0, 0, 1, 1], [], []>} : vector<32x64xf32>, vector<64x32xf32>, vector<32x32xf32> -> vector<32x32xf32>
    %191 = vector.broadcast %188 : vector<1x32xf32> to vector<32x32xf32>
    %192 = arith.addf %190, %191 : vector<32x32xf32>
    %193 = vector.shape_cast %192 : vector<32x32xf32> to vector<2x16x32xf32>
    %194 = vector.shape_cast %186 : vector<2x8x32xf32> to vector<16x32xf32>
    %195 = vector.shape_cast %193 : vector<2x16x32xf32> to vector<32x32xf32>
    %196 = tpu.concatenate %194, %195 in 0 : vector<16x32xf32>, vector<32x32xf32> -> vector<48x32xf32>
    %c200 = arith.constant 200 : index
    %c0_33 = arith.constant 0 : index
    %197 = vector.load %arg2[%c200, %c0_33] : memref<416x128xf32, #tpu.memory_space<vmem>>, vector<32x64xf32>
    %c232 = arith.constant 232 : index
    %c0_34 = arith.constant 0 : index
    %198 = vector.load %arg2[%c232, %c0_34] : memref<416x128xf32, #tpu.memory_space<vmem>>, vector<1x64xf32>
    %cst_35 = arith.constant dense<0.000000e+00> : vector<48x64xf32>
    %199 = tpu.matmul %196, %197, %cst_35 {dimension_numbers = #tpu.dot_dimension_numbers<[1], [0], [0], [1], [0, 0, 1, 1], [], []>} : vector<48x32xf32>, vector<32x64xf32>, vector<48x64xf32> -> vector<48x64xf32>
    %200 = vector.broadcast %198 : vector<1x64xf32> to vector<48x64xf32>
    %201 = arith.addf %199, %200 : vector<48x64xf32>
    %cst_36 = arith.constant 0.000000e+00 : f32
    %202 = vector.broadcast %cst_36 : f32 to vector<48x64xf32>
    %203 = arith.maximumf %201, %202 : vector<48x64xf32>
    %204 = vector.extract_strided_slice %203 {offsets = [0, 0], sizes = [16, 32], strides = [1, 1]} : vector<48x64xf32> to vector<16x32xf32>
    %205 = vector.shape_cast %204 : vector<16x32xf32> to vector<2x8x32xf32>
    %206 = vector.extract_strided_slice %203 {offsets = [16, 32], sizes = [32, 32], strides = [1, 1]} : vector<48x64xf32> to vector<32x32xf32>
    %207 = vector.shape_cast %206 : vector<32x32xf32> to vector<2x16x32xf32>
    %c240 = arith.constant 240 : index
    %c0_37 = arith.constant 0 : index
    %208 = vector.load %arg2[%c240, %c0_37] : memref<416x128xf32, #tpu.memory_space<vmem>>, vector<1x64xf32>
    %c248 = arith.constant 248 : index
    %c0_38 = arith.constant 0 : index
    %209 = vector.load %arg2[%c248, %c0_38] : memref<416x128xf32, #tpu.memory_space<vmem>>, vector<1x2xf32>
    %210 = vector.extract_strided_slice %208 {offsets = [0, 0], sizes = [1, 32], strides = [1, 1]} : vector<1x64xf32> to vector<1x32xf32>
    %211 = vector.extract_strided_slice %209 {offsets = [0, 0], sizes = [1, 1], strides = [1, 1]} : vector<1x2xf32> to vector<1x1xf32>
    %212 = vector.shape_cast %210 : vector<1x32xf32> to vector<1x1x32xf32>
    %213 = vector.broadcast %212 : vector<1x1x32xf32> to vector<2x8x32xf32>
    %214 = arith.mulf %205, %213 : vector<2x8x32xf32>
    %cst_39 = arith.constant dense<0.000000e+00> : vector<2x8xf32>
    %215 = vector.multi_reduction <add>, %214, %cst_39 [2] : vector<2x8x32xf32> to vector<2x8xf32>
    %216 = vector.broadcast %211 : vector<1x1xf32> to vector<2x8xf32>
    %217 = arith.addf %215, %216 : vector<2x8xf32>
    %cst_40 = arith.constant -1.000000e+09 : f32
    %218 = vector.broadcast %cst_40 : f32 to vector<2x8xf32>
    %219 = arith.select %3, %218, %217 : vector<2x8xi1>, vector<2x8xf32>
    %cst_41 = arith.constant dense<0xFF800000> : vector<2xf32>
    %220 = vector.multi_reduction <maximumf>, %219, %cst_41 [1] : vector<2x8xf32> to vector<2xf32>
    %221 = vector.shape_cast %220 : vector<2xf32> to vector<2x1xf32>
    %222 = vector.broadcast %221 : vector<2x1xf32> to vector<2x8xf32>
    %223 = arith.subf %219, %222 : vector<2x8xf32>
    %224 = math.exp %223 : vector<2x8xf32>
    %cst_42 = arith.constant dense<0.000000e+00> : vector<2xf32>
    %225 = vector.multi_reduction <add>, %224, %cst_42 [1] : vector<2x8xf32> to vector<2xf32>
    %226 = vector.shape_cast %225 : vector<2xf32> to vector<2x1xf32>
    %227 = tpu.reciprocal %226 {approx = true} : vector<2x1xf32> -> vector<2x1xf32>
    %228 = vector.broadcast %227 : vector<2x1xf32> to vector<2x8xf32>
    %229 = arith.mulf %224, %228 : vector<2x8xf32>
    %230 = vector.shape_cast %229 : vector<2x8xf32> to vector<2x8x1xf32>
    %231 = vector.broadcast %230 : vector<2x8x1xf32> to vector<2x8x32xf32>
    %232 = arith.mulf %231, %186 : vector<2x8x32xf32>
    %cst_43 = arith.constant dense<0.000000e+00> : vector<2x32xf32>
    %233 = vector.multi_reduction <add>, %232, %cst_43 [1] : vector<2x8x32xf32> to vector<2x32xf32>
    %234 = vector.extract_strided_slice %208 {offsets = [0, 32], sizes = [1, 32], strides = [1, 1]} : vector<1x64xf32> to vector<1x32xf32>
    %235 = vector.extract_strided_slice %209 {offsets = [0, 1], sizes = [1, 1], strides = [1, 1]} : vector<1x2xf32> to vector<1x1xf32>
    %236 = vector.shape_cast %234 : vector<1x32xf32> to vector<1x1x32xf32>
    %237 = vector.broadcast %236 : vector<1x1x32xf32> to vector<2x16x32xf32>
    %238 = arith.mulf %207, %237 : vector<2x16x32xf32>
    %cst_44 = arith.constant dense<0.000000e+00> : vector<2x16xf32>
    %239 = vector.multi_reduction <add>, %238, %cst_44 [2] : vector<2x16x32xf32> to vector<2x16xf32>
    %240 = vector.broadcast %235 : vector<1x1xf32> to vector<2x16xf32>
    %241 = arith.addf %239, %240 : vector<2x16xf32>
    %cst_45 = arith.constant -1.000000e+09 : f32
    %242 = vector.broadcast %cst_45 : f32 to vector<2x16xf32>
    %243 = arith.select %7, %242, %241 : vector<2x16xi1>, vector<2x16xf32>
    %cst_46 = arith.constant dense<0xFF800000> : vector<2xf32>
    %244 = vector.multi_reduction <maximumf>, %243, %cst_46 [1] : vector<2x16xf32> to vector<2xf32>
    %245 = vector.shape_cast %244 : vector<2xf32> to vector<2x1xf32>
    %246 = vector.broadcast %245 : vector<2x1xf32> to vector<2x16xf32>
    %247 = arith.subf %243, %246 : vector<2x16xf32>
    %248 = math.exp %247 : vector<2x16xf32>
    %cst_47 = arith.constant dense<0.000000e+00> : vector<2xf32>
    %249 = vector.multi_reduction <add>, %248, %cst_47 [1] : vector<2x16xf32> to vector<2xf32>
    %250 = vector.shape_cast %249 : vector<2xf32> to vector<2x1xf32>
    %251 = tpu.reciprocal %250 {approx = true} : vector<2x1xf32> -> vector<2x1xf32>
    %252 = vector.broadcast %251 : vector<2x1xf32> to vector<2x16xf32>
    %253 = arith.mulf %248, %252 : vector<2x16xf32>
    %254 = vector.shape_cast %253 : vector<2x16xf32> to vector<2x16x1xf32>
    %255 = vector.broadcast %254 : vector<2x16x1xf32> to vector<2x16x32xf32>
    %256 = arith.mulf %255, %193 : vector<2x16x32xf32>
    %cst_48 = arith.constant dense<0.000000e+00> : vector<2x32xf32>
    %257 = vector.multi_reduction <add>, %256, %cst_48 [1] : vector<2x16x32xf32> to vector<2x32xf32>
    %258 = tpu.concatenate %233, %257 in 1 : vector<2x32xf32>, vector<2x32xf32> -> vector<2x64xf32>
    %c256 = arith.constant 256 : index
    %c0_49 = arith.constant 0 : index
    %259 = vector.load %arg2[%c256, %c0_49] : memref<416x128xf32, #tpu.memory_space<vmem>>, vector<64x64xf32>
    %c320 = arith.constant 320 : index
    %c0_50 = arith.constant 0 : index
    %260 = vector.load %arg2[%c320, %c0_50] : memref<416x128xf32, #tpu.memory_space<vmem>>, vector<1x64xf32>
    %cst_51 = arith.constant dense<0.000000e+00> : vector<2x64xf32>
    %261 = tpu.matmul %258, %259, %cst_51 {dimension_numbers = #tpu.dot_dimension_numbers<[1], [0], [0], [1], [0, 0, 1, 1], [], []>} : vector<2x64xf32>, vector<64x64xf32>, vector<2x64xf32> -> vector<2x64xf32>
    %262 = vector.broadcast %260 : vector<1x64xf32> to vector<2x64xf32>
    %263 = arith.addf %261, %262 : vector<2x64xf32>
    %c328 = arith.constant 328 : index
    %c0_52 = arith.constant 0 : index
    %264 = vector.load %arg2[%c328, %c0_52] : memref<416x128xf32, #tpu.memory_space<vmem>>, vector<1x64xf32>
    %c336 = arith.constant 336 : index
    %c0_53 = arith.constant 0 : index
    %265 = vector.load %arg2[%c336, %c0_53] : memref<416x128xf32, #tpu.memory_space<vmem>>, vector<1x64xf32>
    %c344 = arith.constant 344 : index
    %c0_54 = arith.constant 0 : index
    %266 = vector.load %arg2[%c344, %c0_54] : memref<416x128xf32, #tpu.memory_space<vmem>>, vector<64x8xf32>
    %c408 = arith.constant 408 : index
    %c0_55 = arith.constant 0 : index
    %267 = vector.load %arg2[%c408, %c0_55] : memref<416x128xf32, #tpu.memory_space<vmem>>, vector<1x8xf32>
    %cst_56 = arith.constant dense<0.000000e+00> : vector<2xf32>
    %268 = vector.multi_reduction <add>, %263, %cst_56 [1] : vector<2x64xf32> to vector<2xf32>
    %269 = vector.shape_cast %268 : vector<2xf32> to vector<2x1xf32>
    %cst_57 = arith.constant 6.400000e+01 : f32
    %270 = vector.broadcast %cst_57 : f32 to vector<2x1xf32>
    %271 = arith.divf %269, %270 : vector<2x1xf32>
    %272 = vector.broadcast %271 : vector<2x1xf32> to vector<2x64xf32>
    %273 = arith.subf %263, %272 : vector<2x64xf32>
    %274 = arith.mulf %273, %273 : vector<2x64xf32>
    %cst_58 = arith.constant dense<0.000000e+00> : vector<2xf32>
    %275 = vector.multi_reduction <add>, %274, %cst_58 [1] : vector<2x64xf32> to vector<2xf32>
    %276 = vector.shape_cast %275 : vector<2xf32> to vector<2x1xf32>
    %cst_59 = arith.constant 6.400000e+01 : f32
    %277 = vector.broadcast %cst_59 : f32 to vector<2x1xf32>
    %278 = arith.divf %276, %277 : vector<2x1xf32>
    %279 = vector.broadcast %271 : vector<2x1xf32> to vector<2x64xf32>
    %280 = arith.subf %263, %279 : vector<2x64xf32>
    %cst_60 = arith.constant 9.99999997E-7 : f32
    %281 = vector.broadcast %cst_60 : f32 to vector<2x1xf32>
    %282 = arith.addf %278, %281 : vector<2x1xf32>
    %283 = math.rsqrt %282 : vector<2x1xf32>
    %284 = vector.broadcast %283 : vector<2x1xf32> to vector<2x64xf32>
    %285 = arith.mulf %280, %284 : vector<2x64xf32>
    %286 = vector.broadcast %264 : vector<1x64xf32> to vector<2x64xf32>
    %287 = arith.mulf %285, %286 : vector<2x64xf32>
    %288 = vector.broadcast %265 : vector<1x64xf32> to vector<2x64xf32>
    %289 = arith.addf %287, %288 : vector<2x64xf32>
    %cst_61 = arith.constant dense<0.000000e+00> : vector<2x8xf32>
    %290 = tpu.matmul %289, %266, %cst_61 {dimension_numbers = #tpu.dot_dimension_numbers<[1], [0], [0], [1], [0, 0, 1, 1], [], []>} : vector<2x64xf32>, vector<64x8xf32>, vector<2x8xf32> -> vector<2x8xf32>
    %291 = vector.broadcast %267 : vector<1x8xf32> to vector<2x8xf32>
    %292 = arith.addf %290, %291 : vector<2x8xf32>
    %293 = arith.negf %292 : vector<2x8xf32>
    %294 = math.exp %293 : vector<2x8xf32>
    %cst_62 = arith.constant 1.000000e+00 : f32
    %295 = vector.broadcast %cst_62 : f32 to vector<2x8xf32>
    %296 = arith.addf %295, %294 : vector<2x8xf32>
    %297 = arith.divf %295, %296 : vector<2x8xf32>
    %c0_63 = arith.constant 0 : index
    %c0_64 = arith.constant 0 : index
    %298 = vector.load %arg3[%c0_63, %c0_64] : memref<2x8xf32, #tpu.memory_space<vmem>>, vector<2x8xf32>
    tpu.vector_store %arg3[%c0_63, %c0_64], %297 {strides = array<i32>} : memref<2x8xf32, #tpu.memory_space<vmem>>, vector<2x8xf32>,
    return
  }
}

</mosaic_0001>

<llo_original>
// kernel: net_forward.1
$region0: #{net_forward.1}
  #allocation0 [shape = 'u32[]', space=smem, size = 0x4, offset = 0x4, fixed_abs, tag = 'smem constant byte address 0x4 - core index']
  #allocation1 [shape = 'u32[144,128]{1,0:T(1,128)}', space=vmem, size = 0x12000, scoped, tag = 'internal scratch']
  %s0 = inlined_call_operand.vmem [shape: s32[2,8], index: 0, kind: input, shape index: {}]
  %s1 = inlined_call_operand.hbm [shape: f32[2,16,64], index: 1, kind: input, shape index: {}]
  %s2 = inlined_call_operand.hbm [shape: f32[416,128], index: 2, kind: input, shape index: {}]
  %s3 = inlined_call_operand.hbm [shape: f32[2,8], index: 3, kind: output, shape index: {}]
  %s4 = sld [smem:[#allocation0]]
  $region30: #{net_forward.1} parent=0
    _
  %s6 = ssub.s32 1, %s4
  %s7 = scalar_select 0, %s6, %s4
  $region1: #{net_forward.1} parent=0
    #allocation2 [shape = 'u8[16384]{0}', space=vmem, size = 0x4000, scoped, tag = 'input window, operand 1, single buffered']
    #allocation3 [shape = 's32[1]{0}', space=sflag, size = 0x4, scoped, tag = 'scoped memory for net_forward.1']
    #allocation4 [shape = 's32[1]{0}', space=sflag, size = 0x4, scoped, tag = 'scoped memory for net_forward.1']
    #allocation5 [shape = 'u8[212992]{0}', space=vmem, size = 0x34000, scoped, tag = 'input window, operand 2, single buffered']
    #allocation6 [shape = 's32[1]{0}', space=sflag, size = 0x4, scoped, tag = 'scoped memory for net_forward.1']
    #allocation7 [shape = 'u8[1024]{0}', space=vmem, size = 0x400, scoped, tag = 'output window, operand 0, single buffered']
    %8 = vsyncpa [#allocation3], 0
    %9 = vsyncpa [#allocation6], 0
    %10 = vsyncpa [#allocation4], 0
    // Predicated region
    $region2: #{net_forward.1} parent=1 // pred_check
      _
    $region3: #{net_forward.1} parent=1 // pred_check_branch
      %12 = sbr.rel (0) target = $region5
    $region4: #{net_forward.1} parent=1 // pred_region
      _
    $region5: #{net_forward.1} parent=1 // pred_fallthru
      _
    // Predicated region
    $region6: #{net_forward.1} parent=1 // pred_check
      _
    $region7: #{net_forward.1} parent=1 // pred_check_branch
      %14 = sbr.rel (0) target = $region9
    $region8: #{net_forward.1} parent=1 // pred_region
      %s16 = ssub.s32 512, 512
      %17 = vsyncadd [#allocation3], %s16
      %s18 = sshll.u32 [#allocation2], 4
      %s19 = int_to_ptr.vmem [resolvable:$true] %s18
      %24 = dma.hbm_to_vmem [thread:$0]  %s1, 512, %s19, [#allocation3], 128, 128, 8
    $region9: #{net_forward.1} parent=1 // pred_fallthru
      _
    // Predicated region
    $region10: #{net_forward.1} parent=1 // pred_check
      _
    $region11: #{net_forward.1} parent=1 // pred_check_branch
      %26 = sbr.rel (0) target = $region13
    $region12: #{net_forward.1} parent=1 // pred_region
      %s28 = ssub.s32 6656, 6656
      %29 = vsyncadd [#allocation6], %s28
      %s30 = sshll.u32 [#allocation5], 4
      %s31 = int_to_ptr.vmem [resolvable:$true] %s30
      %36 = dma.hbm_to_vmem [thread:$0]  %s2, 6656, %s31, [#allocation6], 128, 128, 8
    $region13: #{net_forward.1} parent=1 // pred_fallthru
      _
    // Predicated region
    $region14: #{net_forward.1} parent=1 // pred_check
      _
    $region15: #{net_forward.1} parent=1 // pred_check_branch
      %38 = sbr.rel (0) target = $region17
    $region16: #{net_forward.1} parent=1 // pred_region
      %39 = dma.done [#allocation3], 512
    $region17: #{net_forward.1} parent=1 // pred_fallthru
      _
    // Predicated region
    $region18: #{net_forward.1} parent=1 // pred_check
      _
    $region19: #{net_forward.1} parent=1 // pred_check_branch
      %41 = sbr.rel (0) target = $region21
    $region20: #{net_forward.1} parent=1 // pred_region
      %42 = dma.done [#allocation6], 6656
    $region21: #{net_forward.1} parent=1 // pred_fallthru
      _
    %v43 = vld [vmem:[%s0] sm:$0x3]
    %v44 = vld [vmem:[#allocation2] sm:$0xff]
    %v45 = vld [vmem:[#allocation2 + $0x8] sm:$0xff]
    %v46 = vld [vmem:[#allocation2 + $0x10] sm:$0xff]
    %v47 = vld [vmem:[#allocation2 + $0x18] sm:$0xff]
    %vm48 = vcmp.eq.s32.totalorder %v43, 0
    %v49 = vand.u32 2147483647, %v44
    %v50 = vand.u32 2147483647, %v45
    %v51 = vand.u32 2147483647, %v46
    %v52 = vand.u32 2147483647, %v47
    %vm53 = vcmask 523264
    %v54 = vsel %vm53, %v49, 0.0
    %55 = vadd.xlane.f32.xlu0 %v54
    %v56 = vpop.xlane.xlu0 %55
    %v57 = vsel %vm53, %v50, 0.0
    %58 = vadd.xlane.f32.xlu0 %v57
    %v59 = vpop.xlane.xlu0 %58
    %v60 = vsel %vm53, %v51, 0.0
    %61 = vadd.xlane.f32.xlu0 %v60
    %v62 = vpop.xlane.xlu0 %61
    %v63 = vsel %vm53, %v52, 0.0
    %64 = vadd.xlane.f32.xlu0 %v63
    %v65 = vpop.xlane.xlu0 %64
    %vm66 = vcmp.eq.f32.partialorder %v56, 0.0
    %vm67 = vcmp.eq.f32.partialorder %v59, 0.0
    %vm68 = vcmp.eq.f32.partialorder %v62, 0.0
    %vm69 = vcmp.eq.f32.partialorder %v65, 0.0
    %v70 = vld [vmem:[#allocation5] sm:$0xff]
    %v71 = vld [vmem:[#allocation5 + $0x8] sm:$0xff]
    %v72 = vld [vmem:[#allocation5 + $0x10] sm:$0xff]
    %v73 = vld [vmem:[#allocation5 + $0x18] sm:$0xff]
    %v74 = vld [vmem:[#allocation5 + $0x20] sm:$0xff]
    %v75 = vld [vmem:[#allocation5 + $0x28] sm:$0xff]
    %v76 = vld [vmem:[#allocation5 + $0x30] sm:$0x3]
    %v77 = vlaneseq
    %v78 = vand.u32 %v77, 127
    %v79 = vlaneseq
    %v80 = vshrl.u32 %v79, 7
    %v81 = vsub.s32 0, %v80
    %v82 = vrot.slane %v43, %v81
    %84 = vbcast.lane.b32.xlu0 %v82, 256
    %v85 = vpop.permute.xlu0 %84
    %v86 = vlaneseq
    %v87 = vshrl.u32 %v86, 7
    %v88 = vsub.s32 1, %v87
    %v89 = vrot.slane %v43, %v88
    %91 = vbcast.lane.b32.xlu0 %v89, 256
    %v92 = vpop.permute.xlu0 %91
    %vm93 = vcmp.eq.s32.totalorder %v78, %v85
    %vm94 = vcmp.eq.s32.totalorder %v78, %v92
    %v95 = vsel %vm93, 1, 0
    %v96 = vsel %vm94, 1, 0
    %v97 = vcvt.s32.f32 %v95
    %v98 = vcvt.s32.f32 %v96
    %vm99 = vcmask 408576
    %v101 = vsel %vm99, %v97, 0
    %v104 = vsel %vm99, %v98, 0
    %vm106 = vcmask 1041408
    %v108 = vsel %vm106, %v76, 0
    %110 = vmatprep.subr.mxu0 0.0
    %111 = vmatpush1.msra.mxu0 %v70
    %112 = vmatprep.subr.mxu0 0.0
    %113 = vmatpush1.msra.mxu0 %v71
    %114 = vmatprep.subr.mxu0 0.0
    %115 = vmatpush1.msra.mxu0 %v72
    %116 = vmatprep.subr.mxu0 0.0
    %117 = vmatpush1.msra.mxu0 %v73
    %118 = vmatprep.subr.mxu0 0.0
    %119 = vmatpush1.msra.mxu0 %v74
    %120 = vmatprep.subr.mxu0 0.0
    %121 = vmatpush1.msra.mxu0 %v75
    %122 = vmatprep.subr.mxu0 0.0
    %123 = vmatpush1.msra.mxu0 %v108
    %124 = vmatprep.subr.mxu0 0.0
    %125 = vmatpush1.msra.mxu0 0.0
    %126 = vmatprep.subr.mxu0 0.0
    %127 = vmatpush1.msra.mxu0 0.0
    %128 = vmatprep.subr.mxu0 0.0
    %129 = vmatpush1.msra.mxu0 0.0
    %130 = vmatprep.subr.mxu0 0.0
    %131 = vmatpush1.msra.mxu0 0.0
    %132 = vmatprep.subr.mxu0 0.0
    %133 = vmatpush1.msra.mxu0 0.0
    %134 = vmatprep.subr.mxu0 0.0
    %135 = vmatpush1.msra.mxu0 0.0
    %136 = vmatprep.subr.mxu0 0.0
    %137 = vmatpush1.msra.mxu0 0.0
    %138 = vmatprep.subr.mxu0 0.0
    %139 = vmatpush1.msra.mxu0 0.0
    %140 = vmatprep.subr.mxu0 0.0
    %141 = vmatpush1.msra.mxu0 0.0
    %142 = vmatprep.subr.mxu0 0.0
    %143 = vmatpush1.msra.mxu0 0.0
    %144 = vmatprep.subr.mxu0 0.0
    %145 = vmatpush1.msra.mxu0 0.0
    %146 = vmatprep.subr.mxu0 0.0
    %147 = vmatpush1.msra.mxu0 0.0
    %148 = vmatprep.subr.mxu0 0.0
    %149 = vmatpush1.msra.mxu0 0.0
    %150 = vmatprep.subr.mxu0 0.0
    %151 = vmatpush1.msra.mxu0 0.0
    %152 = vmatprep.subr.mxu0 0.0
    %153 = vmatpush1.msra.mxu0 0.0
    %154 = vmatprep.subr.mxu0 0.0
    %155 = vmatpush1.msra.mxu0 0.0
    %156 = vmatprep.subr.mxu0 0.0
    %157 = vmatpush1.msra.mxu0 0.0
    %158 = vmatprep.subr.mxu0 0.0
    %159 = vmatpush1.msra.mxu0 0.0
    %160 = vmatprep.subr.mxu0 0.0
    %161 = vmatpush1.msra.mxu0 0.0
    %162 = vmatprep.subr.mxu0 0.0
    %163 = vmatpush1.msra.mxu0 0.0
    %164 = vmatprep.subr.mxu0 0.0
    %165 = vmatpush1.msra.mxu0 0.0
    %166 = vmatprep.subr.mxu0 0.0
    %167 = vmatpush1.msra.mxu0 0.0
    %168 = vmatprep.subr.mxu0 0.0
    %169 = vmatpush1.msra.mxu0 0.0
    %170 = vmatprep.subr.mxu0 0.0
    %171 = vmatpush1.msra.mxu0 0.0
    %172 = vmatprep.subr.mxu0 0.0
    %173 = vmatpush1.msra.mxu0 0.0
    %174 = vmatprep.mubr.f32.mxu0 0.0
    %175 = vmatmul.mubr.f32.gmra.mrb[0].mxu0 %v101
    %v176 = vpop.f32.mrb[0].mxu0
    %v177 = vadd.f32 0.0, %v176
    %v178 = vpop.f32.mrb[0].mxu0
    %179 = vmatprep.mubr.f32.mxu0 0.0
    %180 = vmatmul.mubr.f32.gmra.mrb[0].mxu0 %v104
    %v181 = vpop.f32.mrb[0].mxu0
    %v182 = vadd.f32 0.0, %v181
    %v183 = vpop.f32.mrb[0].mxu0
    %184 = vdwg.mxu0
    %v185 = vld [vmem:[#allocation5 + $0x38] sm:$0xff]
    %v186 = vld [vmem:[#allocation5 + $0x40] sm:$0xff]
    %v187 = vld [vmem:[#allocation5 + $0x48] sm:$0xff]
    %v188 = vld [vmem:[#allocation5 + $0x50] sm:$0xff]
    %v189 = vld [vmem:[#allocation5 + $0x58] sm:$0xff]
    %v190 = vld [vmem:[#allocation5 + $0x60] sm:$0xff]
    %v191 = vld [vmem:[#allocation5 + $0x68] sm:$0xff]
    %v192 = vld [vmem:[#allocation5 + $0x70] sm:$0xff]
    %v193 = vld [vmem:[#allocation5 + $0x78] sm:$0x1]
    %v194 = vlaneseq
    %v195 = vshrl.u32 %v194, 7
    %v196 = vsub.s32 0, %v195
    %v197 = vrot.slane %v193, %v196
    %vm198 = vcmask 261120
    %v200 = vsel %vm198, %v177, 0
    %v203 = vsel %vm198, %v182, 0
    %205 = vmatprep.subr.mxu0 0.0
    %206 = vmatpush1.msra.mxu0 %v185
    %207 = vmatprep.subr.mxu0 0.0
    %208 = vmatpush1.msra.mxu0 %v186
    %209 = vmatprep.subr.mxu0 0.0
    %210 = vmatpush1.msra.mxu0 %v187
    %211 = vmatprep.subr.mxu0 0.0
    %212 = vmatpush1.msra.mxu0 %v188
    %213 = vmatprep.subr.mxu0 0.0
    %214 = vmatpush1.msra.mxu0 0.0
    %215 = vmatprep.subr.mxu0 0.0
    %216 = vmatpush1.msra.mxu0 0.0
    %217 = vmatprep.subr.mxu0 0.0
    %218 = vmatpush1.msra.mxu0 0.0
    %219 = vmatprep.subr.mxu0 0.0
    %220 = vmatpush1.msra.mxu0 0.0
    %221 = vmatprep.subr.mxu0 0.0
    %222 = vmatpush1.msra.mxu0 0.0
    %223 = vmatprep.subr.mxu0 0.0
    %224 = vmatpush1.msra.mxu0 0.0
    %225 = vmatprep.subr.mxu0 0.0
    %226 = vmatpush1.msra.mxu0 0.0
    %227 = vmatprep.subr.mxu0 0.0
    %228 = vmatpush1.msra.mxu0 0.0
    %229 = vmatprep.subr.mxu0 0.0
    %230 = vmatpush1.msra.mxu0 0.0
    %231 = vmatprep.subr.mxu0 0.0
    %232 = vmatpush1.msra.mxu0 0.0
    %233 = vmatprep.subr.mxu0 0.0
    %234 = vmatpush1.msra.mxu0 0.0
    %235 = vmatprep.subr.mxu0 0.0
    %236 = vmatpush1.msra.mxu0 0.0
    %237 = vmatprep.subr.mxu0 0.0
    %238 = vmatpush1.msra.mxu0 0.0
    %239 = vmatprep.subr.mxu0 0.0
    %240 = vmatpush1.msra.mxu0 0.0
    %241 = vmatprep.subr.mxu0 0.0
    %242 = vmatpush1.msra.mxu0 0.0
    %243 = vmatprep.subr.mxu0 0.0
    %244 = vmatpush1.msra.mxu0 0.0
    %245 = vmatprep.subr.mxu0 0.0
    %246 = vmatpush1.msra.mxu0 0.0
    %247 = vmatprep.subr.mxu0 0.0
    %248 = vmatpush1.msra.mxu0 0.0
    %249 = vmatprep.subr.mxu0 0.0
    %250 = vmatpush1.msra.mxu0 0.0
    %251 = vmatprep.subr.mxu0 0.0
    %252 = vmatpush1.msra.mxu0 0.0
    %253 = vmatprep.subr.mxu0 0.0
    %254 = vmatpush1.msra.mxu0 0.0
    %255 = vmatprep.subr.mxu0 0.0
    %256 = vmatpush1.msra.mxu0 0.0
    %257 = vmatprep.subr.mxu0 0.0
    %258 = vmatpush1.msra.mxu0 0.0
    %259 = vmatprep.subr.mxu0 0.0
    %260 = vmatpush1.msra.mxu0 0.0
    %261 = vmatprep.subr.mxu0 0.0
    %262 = vmatpush1.msra.mxu0 0.0
    %263 = vmatprep.subr.mxu0 0.0
    %264 = vmatpush1.msra.mxu0 0.0
    %265 = vmatprep.subr.mxu0 0.0
    %266 = vmatpush1.msra.mxu0 0.0
    %267 = vmatprep.subr.mxu0 0.0
    %268 = vmatpush1.msra.mxu0 0.0
    %269 = vmatprep.mubr.f32.mxu0 0.0
    %270 = vmatmul.mubr.f32.gmra.mrb[0].mxu0 %v200
    %v271 = vpop.f32.mrb[0].mxu0
    %v272 = vadd.f32 %v197, %v271
    %v273 = vpop.f32.mrb[0].mxu0
    %274 = vmatprep.mubr.f32.mxu0 0.0
    %275 = vmatmul.mubr.f32.gmra.mrb[0].mxu0 %v203
    %v276 = vpop.f32.mrb[0].mxu0
    %v277 = vadd.f32 %v197, %v276
    %v278 = vpop.f32.mrb[0].mxu0
    %279 = vdwg.mxu0
    %v281 = vsel %vm198, 0.0, 0
    %283 = vmatprep.subr.mxu0 0.0
    %284 = vmatpush1.msra.mxu0 %v189
    %285 = vmatprep.subr.mxu0 0.0
    %286 = vmatpush1.msra.mxu0 %v190
    %287 = vmatprep.subr.mxu0 0.0
    %288 = vmatpush1.msra.mxu0 %v191
    %289 = vmatprep.subr.mxu0 0.0
    %290 = vmatpush1.msra.mxu0 %v192
    %291 = vmatprep.subr.mxu0 0.0
    %292 = vmatpush1.msra.mxu0 0.0
    %293 = vmatprep.subr.mxu0 0.0
    %294 = vmatpush1.msra.mxu0 0.0
    %295 = vmatprep.subr.mxu0 0.0
    %296 = vmatpush1.msra.mxu0 0.0
    %297 = vmatprep.subr.mxu0 0.0
    %298 = vmatpush1.msra.mxu0 0.0
    %299 = vmatprep.subr.mxu0 0.0
    %300 = vmatpush1.msra.mxu0 0.0
    %301 = vmatprep.subr.mxu0 0.0
    %302 = vmatpush1.msra.mxu0 0.0
    %303 = vmatprep.subr.mxu0 0.0
    %304 = vmatpush1.msra.mxu0 0.0
    %305 = vmatprep.subr.mxu0 0.0
    %306 = vmatpush1.msra.mxu0 0.0
    %307 = vmatprep.subr.mxu0 0.0
    %308 = vmatpush1.msra.mxu0 0.0
    %309 = vmatprep.subr.mxu0 0.0
    %310 = vmatpush1.msra.mxu0 0.0
    %311 = vmatprep.subr.mxu0 0.0
    %312 = vmatpush1.msra.mxu0 0.0
    %313 = vmatprep.subr.mxu0 0.0
    %314 = vmatpush1.msra.mxu0 0.0
    %315 = vmatprep.subr.mxu0 0.0
    %316 = vmatpush1.msra.mxu0 0.0
    %317 = vmatprep.subr.mxu0 0.0
    %318 = vmatpush1.msra.mxu0 0.0
    %319 = vmatprep.subr.mxu0 0.0
    %320 = vmatpush1.msra.mxu0 0.0
    %321 = vmatprep.subr.mxu0 0.0
    %322 = vmatpush1.msra.mxu0 0.0
    %323 = vmatprep.subr.mxu0 0.0
    %324 = vmatpush1.msra.mxu0 0.0
    %325 = vmatprep.subr.mxu0 0.0
    %326 = vmatpush1.msra.mxu0 0.0
    %327 = vmatprep.subr.mxu0 0.0
    %328 = vmatpush1.msra.mxu0 0.0
    %329 = vmatprep.subr.mxu0 0.0
    %330 = vmatpush1.msra.mxu0 0.0
    %331 = vmatprep.subr.mxu0 0.0
    %332 = vmatpush1.msra.mxu0 0.0
    %333 = vmatprep.subr.mxu0 0.0
    %334 = vmatpush1.msra.mxu0 0.0
    %335 = vmatprep.subr.mxu0 0.0
    %336 = vmatpush1.msra.mxu0 0.0
    %337 = vmatprep.subr.mxu0 0.0
    %338 = vmatpush1.msra.mxu0 0.0
    %339 = vmatprep.subr.mxu0 0.0
    %340 = vmatpush1.msra.mxu0 0.0
    %341 = vmatprep.subr.mxu0 0.0
    %342 = vmatpush1.msra.mxu0 0.0
    %343 = vmatprep.subr.mxu0 0.0
    %344 = vmatpush1.msra.mxu0 0.0
    %345 = vmatprep.subr.mxu0 0.0
    %346 = vmatpush1.msra.mxu0 0.0
    %347 = vmatprep.mubr.f32.mxu0 0.0
    %348 = vmatmul.mubr.f32.gmra.mrb[0].mxu0 %v281
    %v349 = vpop.f32.mrb[0].mxu0
    %v350 = vadd.f32 0.0, %v349
    %v351 = vpop.f32.mrb[0].mxu0
    %352 = vdwg.mxu0
    %v354 = vrot.slane %v350, 1
    %v357 = vadd.f32 %v272, %v350
    %v358 = vadd.f32 %v277, %v354
    %v359 = vxor.u32 %v357, 2147483648
    %v360 = vxor.u32 %v358, 2147483648
    %v361 = vmul.f32 %v359, 1.442695
    %v362 = vpow.pop %v361
    %v363 = vmul.f32 %v360, 1.442695
    %v364 = vpow.pop %v363
    %v365 = vadd.f32 %v362, 1.0
    %v366 = vadd.f32 %v364, 1.0
    %v367 = vrcp.pop %v365
    %v368 = vmul.f32 1.0, %v367
    %v369 = vrcp.pop %v366
    %v370 = vmul.f32 1.0, %v369
    %v371 = vtanh.pop %v357
    %v372 = vtanh.pop %v358
    %v373 = vmul.f32 %v368, 0.0
    %v374 = vmul.f32 %v370, 0.0
    %377 = vrot.lane.b32.xlu0 %v371, 64
    %v378 = vpop.permute.xlu0 %377
    %379 = vrot.lane.b32.xlu0 %v372, 64
    %v380 = vpop.permute.xlu0 %379
    %v383 = vmul.f32 %v368, %v378
    %v384 = vmul.f32 %v370, %v380
    %387 = vrot.lane.b32.xlu0 %v383, 32
    %v388 = vpop.permute.xlu0 %387
    %389 = vrot.lane.b32.xlu0 %v384, 32
    %v390 = vpop.permute.xlu0 %389
    %v393 = vadd.f32 %v373, %v388
    %v394 = vadd.f32 %v374, %v390
    %v395 = vtanh.pop %v393
    %v396 = vtanh.pop %v394
    %399 = vrot.lane.b32.xlu0 %v395, 64
    %v400 = vpop.permute.xlu0 %399
    %401 = vrot.lane.b32.xlu0 %v396, 64
    %v402 = vpop.permute.xlu0 %401
    %v405 = vmul.f32 %v368, %v400
    %v406 = vmul.f32 %v370, %v402
    %v409 = vrot.slane %v406, 7
    %vm410 = vcmask 1041409
    %v411 = vsel %vm410, %v409, %v405
    %412 = vrot.lane.b32.xlu0 %v411, 32
    %v413 = vpop.permute.xlu0 %412
    %v414 = vsel %vm198, %v413, 0
    %416 = vmatprep.subr.mxu0 0.0
    %417 = vmatpush1.msra.mxu0 %v189
    %418 = vmatprep.subr.mxu0 0.0
    %419 = vmatpush1.msra.mxu0 %v190
    %420 = vmatprep.subr.mxu0 0.0
    %421 = vmatpush1.msra.mxu0 %v191
    %422 = vmatprep.subr.mxu0 0.0
    %423 = vmatpush1.msra.mxu0 %v192
    %424 = vmatprep.subr.mxu0 0.0
    %425 = vmatpush1.msra.mxu0 0.0
    %426 = vmatprep.subr.mxu0 0.0
    %427 = vmatpush1.msra.mxu0 0.0
    %428 = vmatprep.subr.mxu0 0.0
    %429 = vmatpush1.msra.mxu0 0.0
    %430 = vmatprep.subr.mxu0 0.0
    %431 = vmatpush1.msra.mxu0 0.0
    %432 = vmatprep.subr.mxu0 0.0
    %433 = vmatpush1.msra.mxu0 0.0
    %434 = vmatprep.subr.mxu0 0.0
    %435 = vmatpush1.msra.mxu0 0.0
    %436 = vmatprep.subr.mxu0 0.0
    %437 = vmatpush1.msra.mxu0 0.0
    %438 = vmatprep.subr.mxu0 0.0
    %439 = vmatpush1.msra.mxu0 0.0
    %440 = vmatprep.subr.mxu0 0.0
    %441 = vmatpush1.msra.mxu0 0.0
    %442 = vmatprep.subr.mxu0 0.0
    %443 = vmatpush1.msra.mxu0 0.0
    %444 = vmatprep.subr.mxu0 0.0
    %445 = vmatpush1.msra.mxu0 0.0
    %446 = vmatprep.subr.mxu0 0.0
    %447 = vmatpush1.msra.mxu0 0.0
    %448 = vmatprep.subr.mxu0 0.0
    %449 = vmatpush1.msra.mxu0 0.0
    %450 = vmatprep.subr.mxu0 0.0
    %451 = vmatpush1.msra.mxu0 0.0
    %452 = vmatprep.subr.mxu0 0.0
    %453 = vmatpush1.msra.mxu0 0.0
    %454 = vmatprep.subr.mxu0 0.0
    %455 = vmatpush1.msra.mxu0 0.0
    %456 = vmatprep.subr.mxu0 0.0
    %457 = vmatpush1.msra.mxu0 0.0
    %458 = vmatprep.subr.mxu0 0.0
    %459 = vmatpush1.msra.mxu0 0.0
    %460 = vmatprep.subr.mxu0 0.0
    %461 = vmatpush1.msra.mxu0 0.0
    %462 = vmatprep.subr.mxu0 0.0
    %463 = vmatpush1.msra.mxu0 0.0
    %464 = vmatprep.subr.mxu0 0.0
    %465 = vmatpush1.msra.mxu0 0.0
    %466 = vmatprep.subr.mxu0 0.0
    %467 = vmatpush1.msra.mxu0 0.0
    %468 = vmatprep.subr.mxu0 0.0
    %469 = vmatpush1.msra.mxu0 0.0
    %470 = vmatprep.subr.mxu0 0.0
    %471 = vmatpush1.msra.mxu0 0.0
    %472 = vmatprep.subr.mxu0 0.0
    %473 = vmatpush1.msra.mxu0 0.0
    %474 = vmatprep.subr.mxu0 0.0
    %475 = vmatpush1.msra.mxu0 0.0
    %476 = vmatprep.subr.mxu0 0.0
    %477 = vmatpush1.msra.mxu0 0.0
    %478 = vmatprep.subr.mxu0 0.0
    %479 = vmatpush1.msra.mxu0 0.0
    %480 = vmatprep.mubr.f32.mxu0 0.0
    %481 = vmatmul.mubr.f32.gmra.mrb[0].mxu0 %v414
    %v482 = vpop.f32.mrb[0].mxu0
    %v483 = vadd.f32 0.0, %v482
    %v484 = vpop.f32.mrb[0].mxu0
    %485 = vdwg.mxu0
    %v487 = vrot.slane %v483, 7
    %v490 = vadd.f32 %v272, %v487
    %v491 = vadd.f32 %v277, %v483
    %v492 = vxor.u32 %v490, 2147483648
    %v493 = vxor.u32 %v491, 2147483648
    %v494 = vmul.f32 %v492, 1.442695
    %v495 = vpow.pop %v494
    %v496 = vmul.f32 %v493, 1.442695
    %v497 = vpow.pop %v496
    %v498 = vadd.f32 %v495, 1.0
    %v499 = vadd.f32 %v497, 1.0
    %v500 = vrcp.pop %v498
    %v501 = vmul.f32 1.0, %v500
    %v502 = vrcp.pop %v499
    %v503 = vmul.f32 1.0, %v502
    %v504 = vtanh.pop %v490
    %v505 = vtanh.pop %v491
    %v508 = vrot.slane %v393, 7
    %v509 = vrot.slane %v394, 7
    %v512 = vmul.f32 %v501, %v508
    %v513 = vmul.f32 %v503, %v509
    %516 = vrot.lane.b32.xlu0 %v504, 64
    %v517 = vpop.permute.xlu0 %516
    %518 = vrot.lane.b32.xlu0 %v505, 64
    %v519 = vpop.permute.xlu0 %518
    %v522 = vmul.f32 %v501, %v517
    %v523 = vmul.f32 %v503, %v519
    %526 = vrot.lane.b32.xlu0 %v522, 32
    %v527 = vpop.permute.xlu0 %526
    %528 = vrot.lane.b32.xlu0 %v523, 32
    %v529 = vpop.permute.xlu0 %528
    %v532 = vadd.f32 %v512, %v527
    %v533 = vadd.f32 %v513, %v529
    %v534 = vtanh.pop %v532
    %v535 = vtanh.pop %v533
    %538 = vrot.lane.b32.xlu0 %v534, 64
    %v539 = vpop.permute.xlu0 %538
    %540 = vrot.lane.b32.xlu0 %v535, 64
    %v541 = vpop.permute.xlu0 %540
    %v544 = vmul.f32 %v501, %v539
    %v545 = vmul.f32 %v503, %v541
    %v548 = vrot.slane %v544, 1
    %v549 = vsel %vm410, %v545, %v548
    %550 = vrot.lane.b32.xlu0 %v549, 32
    %v551 = vpop.permute.xlu0 %550
    %v552 = vsel %vm198, %v551, 0
    %554 = vmatprep.subr.mxu0 0.0
    %555 = vmatpush1.msra.mxu0 %v189
    %556 = vmatprep.subr.mxu0 0.0
    %557 = vmatpush1.msra.mxu0 %v190
    %558 = vmatprep.subr.mxu0 0.0
    %559 = vmatpush1.msra.mxu0 %v191
    %560 = vmatprep.subr.mxu0 0.0
    %561 = vmatpush1.msra.mxu0 %v192
    %562 = vmatprep.subr.mxu0 0.0
    %563 = vmatpush1.msra.mxu0 0.0
    %564 = vmatprep.subr.mxu0 0.0
    %565 = vmatpush1.msra.mxu0 0.0
    %566 = vmatprep.subr.mxu0 0.0
    %567 = vmatpush1.msra.mxu0 0.0
    %568 = vmatprep.subr.mxu0 0.0
    %569 = vmatpush1.msra.mxu0 0.0
    %570 = vmatprep.subr.mxu0 0.0
    %571 = vmatpush1.msra.mxu0 0.0
    %572 = vmatprep.subr.mxu0 0.0
    %573 = vmatpush1.msra.mxu0 0.0
    %574 = vmatprep.subr.mxu0 0.0
    %575 = vmatpush1.msra.mxu0 0.0
    %576 = vmatprep.subr.mxu0 0.0
    %577 = vmatpush1.msra.mxu0 0.0
    %578 = vmatprep.subr.mxu0 0.0
    %579 = vmatpush1.msra.mxu0 0.0
    %580 = vmatprep.subr.mxu0 0.0
    %581 = vmatpush1.msra.mxu0 0.0
    %582 = vmatprep.subr.mxu0 0.0
    %583 = vmatpush1.msra.mxu0 0.0
    %584 = vmatprep.subr.mxu0 0.0
    %585 = vmatpush1.msra.mxu0 0.0
    %586 = vmatprep.subr.mxu0 0.0
    %587 = vmatpush1.msra.mxu0 0.0
    %588 = vmatprep.subr.mxu0 0.0
    %589 = vmatpush1.msra.mxu0 0.0
    %590 = vmatprep.subr.mxu0 0.0
    %591 = vmatpush1.msra.mxu0 0.0
    %592 = vmatprep.subr.mxu0 0.0
    %593 = vmatpush1.msra.mxu0 0.0
    %594 = vmatprep.subr.mxu0 0.0
    %595 = vmatpush1.msra.mxu0 0.0
    %596 = vmatprep.subr.mxu0 0.0
    %597 = vmatpush1.msra.mxu0 0.0
    %598 = vmatprep.subr.mxu0 0.0
    %599 = vmatpush1.msra.mxu0 0.0
    %600 = vmatprep.subr.mxu0 0.0
    %601 = vmatpush1.msra.mxu0 0.0
    %602 = vmatprep.subr.mxu0 0.0
    %603 = vmatpush1.msra.mxu0 0.0
    %604 = vmatprep.subr.mxu0 0.0
    %605 = vmatpush1.msra.mxu0 0.0
    %606 = vmatprep.subr.mxu0 0.0
    %607 = vmatpush1.msra.mxu0 0.0
    %608 = vmatprep.subr.mxu0 0.0
    %609 = vmatpush1.msra.mxu0 0.0
    %610 = vmatprep.subr.mxu0 0.0
    %611 = vmatpush1.msra.mxu0 0.0
    %612 = vmatprep.subr.mxu0 0.0
    %613 = vmatpush1.msra.mxu0 0.0
    %614 = vmatprep.subr.mxu0 0.0
    %615 = vmatpush1.msra.mxu0 0.0
    %616 = vmatprep.subr.mxu0 0.0
    %617 = vmatpush1.msra.mxu0 0.0
    %618 = vmatprep.mubr.f32.mxu0 0.0
    %619 = vmatmul.mubr.f32.gmra.mrb[0].mxu0 %v552
    %v620 = vpop.f32.mrb[0].mxu0
    %v621 = vadd.f32 0.0, %v620
    %v622 = vpop.f32.mrb[0].mxu0
    %623 = vdwg.mxu0
    %v625 = vrot.slane %v621, 6
    %v626 = vrot.slane %v621, 7
    %v629 = vadd.f32 %v272, %v625
    %v630 = vadd.f32 %v277, %v626
    %v631 = vxor.u32 %v629, 2147483648
    %v632 = vxor.u32 %v630, 2147483648
    %v633 = vmul.f32 %v631, 1.442695
    %v634 = vpow.pop %v633
    %v635 = vmul.f32 %v632, 1.442695
    %v636 = vpow.pop %v635
    %v637 = vadd.f32 %v634, 1.0
    %v638 = vadd.f32 %v636, 1.0
    %v639 = vrcp.pop %v637
    %v640 = vmul.f32 1.0, %v639
    %v641 = vrcp.pop %v638
    %v642 = vmul.f32 1.0, %v641
    %v643 = vtanh.pop %v629
    %v644 = vtanh.pop %v630
    %v647 = vrot.slane %v532, 7
    %v648 = vrot.slane %v533, 7
    %v651 = vmul.f32 %v640, %v647
    %v652 = vmul.f32 %v642, %v648
    %655 = vrot.lane.b32.xlu0 %v643, 64
    %v656 = vpop.permute.xlu0 %655
    %657 = vrot.lane.b32.xlu0 %v644, 64
    %v658 = vpop.permute.xlu0 %657
    %v661 = vmul.f32 %v640, %v656
    %v662 = vmul.f32 %v642, %v658
    %665 = vrot.lane.b32.xlu0 %v661, 32
    %v666 = vpop.permute.xlu0 %665
    %667 = vrot.lane.b32.xlu0 %v662, 32
    %v668 = vpop.permute.xlu0 %667
    %v671 = vadd.f32 %v651, %v666
    %v672 = vadd.f32 %v652, %v668
    %v673 = vtanh.pop %v671
    %v674 = vtanh.pop %v672
    %677 = vrot.lane.b32.xlu0 %v673, 64
    %v678 = vpop.permute.xlu0 %677
    %679 = vrot.lane.b32.xlu0 %v674, 64
    %v680 = vpop.permute.xlu0 %679
    %v683 = vmul.f32 %v640, %v678
    %v684 = vmul.f32 %v642, %v680
    %v687 = vrot.slane %v683, 2
    %v688 = vrot.slane %v684, 1
    %v689 = vsel %vm410, %v688, %v687
    %690 = vrot.lane.b32.xlu0 %v689, 32
    %v691 = vpop.permute.xlu0 %690
    %v692 = vsel %vm198, %v691, 0
    %694 = vmatprep.subr.mxu0 0.0
    %695 = vmatpush1.msra.mxu0 %v189
    %696 = vmatprep.subr.mxu0 0.0
    %697 = vmatpush1.msra.mxu0 %v190
    %698 = vmatprep.subr.mxu0 0.0
    %699 = vmatpush1.msra.mxu0 %v191
    %700 = vmatprep.subr.mxu0 0.0
    %701 = vmatpush1.msra.mxu0 %v192
    %702 = vmatprep.subr.mxu0 0.0
    %703 = vmatpush1.msra.mxu0 0.0
    %704 = vmatprep.subr.mxu0 0.0
    %705 = vmatpush1.msra.mxu0 0.0
    %706 = vmatprep.subr.mxu0 0.0
    %707 = vmatpush1.msra.mxu0 0.0
    %708 = vmatprep.subr.mxu0 0.0
    %709 = vmatpush1.msra.mxu0 0.0
    %710 = vmatprep.subr.mxu0 0.0
    %711 = vmatpush1.msra.mxu0 0.0
    %712 = vmatprep.subr.mxu0 0.0
    %713 = vmatpush1.msra.mxu0 0.0
    %714 = vmatprep.subr.mxu0 0.0
    %715 = vmatpush1.msra.mxu0 0.0
    %716 = vmatprep.subr.mxu0 0.0
    %717 = vmatpush1.msra.mxu0 0.0
    %718 = vmatprep.subr.mxu0 0.0
    %719 = vmatpush1.msra.mxu0 0.0
    %720 = vmatprep.subr.mxu0 0.0
    %721 = vmatpush1.msra.mxu0 0.0
    %722 = vmatprep.subr.mxu0 0.0
    %723 = vmatpush1.msra.mxu0 0.0
    %724 = vmatprep.subr.mxu0 0.0
    %725 = vmatpush1.msra.mxu0 0.0
    %726 = vmatprep.subr.mxu0 0.0
    %727 = vmatpush1.msra.mxu0 0.0
    %728 = vmatprep.subr.mxu0 0.0
    %729 = vmatpush1.msra.mxu0 0.0
    %730 = vmatprep.subr.mxu0 0.0
    %731 = vmatpush1.msra.mxu0 0.0
    %732 = vmatprep.subr.mxu0 0.0
    %733 = vmatpush1.msra.mxu0 0.0
    %734 = vmatprep.subr.mxu0 0.0
    %735 = vmatpush1.msra.mxu0 0.0
    %736 = vmatprep.subr.mxu0 0.0
    %737 = vmatpush1.msra.mxu0 0.0
    %738 = vmatprep.subr.mxu0 0.0
    %739 = vmatpush1.msra.mxu0 0.0
    %740 = vmatprep.subr.mxu0 0.0
    %741 = vmatpush1.msra.mxu0 0.0
    %742 = vmatprep.subr.mxu0 0.0
    %743 = vmatpush1.msra.mxu0 0.0
    %744 = vmatprep.subr.mxu0 0.0
    %745 = vmatpush1.msra.mxu0 0.0
    %746 = vmatprep.subr.mxu0 0.0
    %747 = vmatpush1.msra.mxu0 0.0
    %748 = vmatprep.subr.mxu0 0.0
    %749 = vmatpush1.msra.mxu0 0.0
    %750 = vmatprep.subr.mxu0 0.0
    %751 = vmatpush1.msra.mxu0 0.0
    %752 = vmatprep.subr.mxu0 0.0
    %753 = vmatpush1.msra.mxu0 0.0
    %754 = vmatprep.subr.mxu0 0.0
    %755 = vmatpush1.msra.mxu0 0.0
    %756 = vmatprep.subr.mxu0 0.0
    %757 = vmatpush1.msra.mxu0 0.0
    %758 = vmatprep.mubr.f32.mxu0 0.0
    %759 = vmatmul.mubr.f32.gmra.mrb[0].mxu0 %v692
    %v760 = vpop.f32.mrb[0].mxu0
    %v761 = vadd.f32 0.0, %v760
    %v762 = vpop.f32.mrb[0].mxu0
    %763 = vdwg.mxu0
    %v765 = vrot.slane %v761, 5
    %v766 = vrot.slane %v761, 6
    %v769 = vadd.f32 %v272, %v765
    %v770 = vadd.f32 %v277, %v766
    %v771 = vxor.u32 %v769, 2147483648
    %v772 = vxor.u32 %v770, 2147483648
    %v773 = vmul.f32 %v771, 1.442695
    %v774 = vpow.pop %v773
    %v775 = vmul.f32 %v772, 1.442695
    %v776 = vpow.pop %v775
    %v777 = vadd.f32 %v774, 1.0
    %v778 = vadd.f32 %v776, 1.0
    %v779 = vrcp.pop %v777
    %v780 = vmul.f32 1.0, %v779
    %v781 = vrcp.pop %v778
    %v782 = vmul.f32 1.0, %v781
    %v783 = vtanh.pop %v769
    %v784 = vtanh.pop %v770
    %v787 = vrot.slane %v671, 7
    %v788 = vrot.slane %v672, 7
    %v791 = vmul.f32 %v780, %v787
    %v792 = vmul.f32 %v782, %v788
    %795 = vrot.lane.b32.xlu0 %v783, 64
    %v796 = vpop.permute.xlu0 %795
    %797 = vrot.lane.b32.xlu0 %v784, 64
    %v798 = vpop.permute.xlu0 %797
    %v801 = vmul.f32 %v780, %v796
    %v802 = vmul.f32 %v782, %v798
    %805 = vrot.lane.b32.xlu0 %v801, 32
    %v806 = vpop.permute.xlu0 %805
    %807 = vrot.lane.b32.xlu0 %v802, 32
    %v808 = vpop.permute.xlu0 %807
    %v811 = vadd.f32 %v791, %v806
    %v812 = vadd.f32 %v792, %v808
    %v813 = vtanh.pop %v811
    %v814 = vtanh.pop %v812
    %817 = vrot.lane.b32.xlu0 %v813, 64
    %v818 = vpop.permute.xlu0 %817
    %819 = vrot.lane.b32.xlu0 %v814, 64
    %v820 = vpop.permute.xlu0 %819
    %v823 = vmul.f32 %v780, %v818
    %v824 = vmul.f32 %v782, %v820
    %v827 = vrot.slane %v823, 3
    %v828 = vrot.slane %v824, 2
    %v829 = vsel %vm410, %v828, %v827
    %830 = vrot.lane.b32.xlu0 %v829, 32
    %v831 = vpop.permute.xlu0 %830
    %v832 = vsel %vm198, %v831, 0
    %834 = vmatprep.subr.mxu0 0.0
    %835 = vmatpush1.msra.mxu0 %v189
    %836 = vmatprep.subr.mxu0 0.0
    %837 = vmatpush1.msra.mxu0 %v190
    %838 = vmatprep.subr.mxu0 0.0
    %839 = vmatpush1.msra.mxu0 %v191
    %840 = vmatprep.subr.mxu0 0.0
    %841 = vmatpush1.msra.mxu0 %v192
    %842 = vmatprep.subr.mxu0 0.0
    %843 = vmatpush1.msra.mxu0 0.0
    %844 = vmatprep.subr.mxu0 0.0
    %845 = vmatpush1.msra.mxu0 0.0
    %846 = vmatprep.subr.mxu0 0.0
    %847 = vmatpush1.msra.mxu0 0.0
    %848 = vmatprep.subr.mxu0 0.0
    %849 = vmatpush1.msra.mxu0 0.0
    %850 = vmatprep.subr.mxu0 0.0
    %851 = vmatpush1.msra.mxu0 0.0
    %852 = vmatprep.subr.mxu0 0.0
    %853 = vmatpush1.msra.mxu0 0.0
    %854 = vmatprep.subr.mxu0 0.0
    %855 = vmatpush1.msra.mxu0 0.0
    %856 = vmatprep.subr.mxu0 0.0
    %857 = vmatpush1.msra.mxu0 0.0
    %858 = vmatprep.subr.mxu0 0.0
    %859 = vmatpush1.msra.mxu0 0.0
    %860 = vmatprep.subr.mxu0 0.0
    %861 = vmatpush1.msra.mxu0 0.0
    %862 = vmatprep.subr.mxu0 0.0
    %863 = vmatpush1.msra.mxu0 0.0
    %864 = vmatprep.subr.mxu0 0.0
    %865 = vmatpush1.msra.mxu0 0.0
    %866 = vmatprep.subr.mxu0 0.0
    %867 = vmatpush1.msra.mxu0 0.0
    %868 = vmatprep.subr.mxu0 0.0
    %869 = vmatpush1.msra.mxu0 0.0
    %870 = vmatprep.subr.mxu0 0.0
    %871 = vmatpush1.msra.mxu0 0.0
    %872 = vmatprep.subr.mxu0 0.0
    %873 = vmatpush1.msra.mxu0 0.0
    %874 = vmatprep.subr.mxu0 0.0
    %875 = vmatpush1.msra.mxu0 0.0
    %876 = vmatprep.subr.mxu0 0.0
    %877 = vmatpush1.msra.mxu0 0.0
    %878 = vmatprep.subr.mxu0 0.0
    %879 = vmatpush1.msra.mxu0 0.0
    %880 = vmatprep.subr.mxu0 0.0
    %881 = vmatpush1.msra.mxu0 0.0
    %882 = vmatprep.subr.mxu0 0.0
    %883 = vmatpush1.msra.mxu0 0.0
    %884 = vmatprep.subr.mxu0 0.0
    %885 = vmatpush1.msra.mxu0 0.0
    %886 = vmatprep.subr.mxu0 0.0
    %887 = vmatpush1.msra.mxu0 0.0
    %888 = vmatprep.subr.mxu0 0.0
    %889 = vmatpush1.msra.mxu0 0.0
    %890 = vmatprep.subr.mxu0 0.0
    %891 = vmatpush1.msra.mxu0 0.0
    %892 = vmatprep.subr.mxu0 0.0
    %893 = vmatpush1.msra.mxu0 0.0
    %894 = vmatprep.subr.mxu0 0.0
    %895 = vmatpush1.msra.mxu0 0.0
    %896 = vmatprep.subr.mxu0 0.0
    %897 = vmatpush1.msra.mxu0 0.0
    %898 = vmatprep.mubr.f32.mxu0 0.0
    %899 = vmatmul.mubr.f32.gmra.mrb[0].mxu0 %v832
    %v900 = vpop.f32.mrb[0].mxu0
    %v901 = vadd.f32 0.0, %v900
    %v902 = vpop.f32.mrb[0].mxu0
    %903 = vdwg.mxu0
    %v905 = vrot.slane %v901, 4
    %v906 = vrot.slane %v901, 5
    %v909 = vadd.f32 %v272, %v905
    %v910 = vadd.f32 %v277, %v906
    %v911 = vxor.u32 %v909, 2147483648
    %v912 = vxor.u32 %v910, 2147483648
    %v913 = vmul.f32 %v911, 1.442695
    %v914 = vpow.pop %v913
    %v915 = vmul.f32 %v912, 1.442695
    %v916 = vpow.pop %v915
    %v917 = vadd.f32 %v914, 1.0
    %v918 = vadd.f32 %v916, 1.0
    %v919 = vrcp.pop %v917
    %v920 = vmul.f32 1.0, %v919
    %v921 = vrcp.pop %v918
    %v922 = vmul.f32 1.0, %v921
    %v923 = vtanh.pop %v909
    %v924 = vtanh.pop %v910
    %v927 = vrot.slane %v811, 7
    %v928 = vrot.slane %v812, 7
    %v931 = vmul.f32 %v920, %v927
    %v932 = vmul.f32 %v922, %v928
    %935 = vrot.lane.b32.xlu0 %v923, 64
    %v936 = vpop.permute.xlu0 %935
    %937 = vrot.lane.b32.xlu0 %v924, 64
    %v938 = vpop.permute.xlu0 %937
    %v941 = vmul.f32 %v920, %v936
    %v942 = vmul.f32 %v922, %v938
    %945 = vrot.lane.b32.xlu0 %v941, 32
    %v946 = vpop.permute.xlu0 %945
    %947 = vrot.lane.b32.xlu0 %v942, 32
    %v948 = vpop.permute.xlu0 %947
    %v951 = vadd.f32 %v931, %v946
    %v952 = vadd.f32 %v932, %v948
    %v953 = vtanh.pop %v951
    %v954 = vtanh.pop %v952
    %957 = vrot.lane.b32.xlu0 %v953, 64
    %v958 = vpop.permute.xlu0 %957
    %959 = vrot.lane.b32.xlu0 %v954, 64
    %v960 = vpop.permute.xlu0 %959
    %v963 = vmul.f32 %v920, %v958
    %v964 = vmul.f32 %v922, %v960
    %v967 = vrot.slane %v963, 4
    %v968 = vrot.slane %v964, 3
    %v969 = vsel %vm410, %v968, %v967
    %970 = vrot.lane.b32.xlu0 %v969, 32
    %v971 = vpop.permute.xlu0 %970
    %v972 = vsel %vm198, %v971, 0
    %974 = vmatprep.subr.mxu0 0.0
    %975 = vmatpush1.msra.mxu0 %v189
    %976 = vmatprep.subr.mxu0 0.0
    %977 = vmatpush1.msra.mxu0 %v190
    %978 = vmatprep.subr.mxu0 0.0
    %979 = vmatpush1.msra.mxu0 %v191
    %980 = vmatprep.subr.mxu0 0.0
    %981 = vmatpush1.msra.mxu0 %v192
    %982 = vmatprep.subr.mxu0 0.0
    %983 = vmatpush1.msra.mxu0 0.0
    %984 = vmatprep.subr.mxu0 0.0
    %985 = vmatpush1.msra.mxu0 0.0
    %986 = vmatprep.subr.mxu0 0.0
    %987 = vmatpush1.msra.mxu0 0.0
    %988 = vmatprep.subr.mxu0 0.0
    %989 = vmatpush1.msra.mxu0 0.0
    %990 = vmatprep.subr.mxu0 0.0
    %991 = vmatpush1.msra.mxu0 0.0
    %992 = vmatprep.subr.mxu0 0.0
    %993 = vmatpush1.msra.mxu0 0.0
    %994 = vmatprep.subr.mxu0 0.0
    %995 = vmatpush1.msra.mxu0 0.0
    %996 = vmatprep.subr.mxu0 0.0
    %997 = vmatpush1.msra.mxu0 0.0
    %998 = vmatprep.subr.mxu0 0.0
    %999 = vmatpush1.msra.mxu0 0.0
    %1000 = vmatprep.subr.mxu0 0.0
    %1001 = vmatpush1.msra.mxu0 0.0
    %1002 = vmatprep.subr.mxu0 0.0
    %1003 = vmatpush1.msra.mxu0 0.0
    %1004 = vmatprep.subr.mxu0 0.0
    %1005 = vmatpush1.msra.mxu0 0.0
    %1006 = vmatprep.subr.mxu0 0.0
    %1007 = vmatpush1.msra.mxu0 0.0
    %1008 = vmatprep.subr.mxu0 0.0
    %1009 = vmatpush1.msra.mxu0 0.0
    %1010 = vmatprep.subr.mxu0 0.0
    %1011 = vmatpush1.msra.mxu0 0.0
    %1012 = vmatprep.subr.mxu0 0.0
    %1013 = vmatpush1.msra.mxu0 0.0
    %1014 = vmatprep.subr.mxu0 0.0
    %1015 = vmatpush1.msra.mxu0 0.0
    %1016 = vmatprep.subr.mxu0 0.0
    %1017 = vmatpush1.msra.mxu0 0.0
    %1018 = vmatprep.subr.mxu0 0.0
    %1019 = vmatpush1.msra.mxu0 0.0
    %1020 = vmatprep.subr.mxu0 0.0
    %1021 = vmatpush1.msra.mxu0 0.0
    %1022 = vmatprep.subr.mxu0 0.0
    %1023 = vmatpush1.msra.mxu0 0.0
    %1024 = vmatprep.subr.mxu0 0.0
    %1025 = vmatpush1.msra.mxu0 0.0
    %1026 = vmatprep.subr.mxu0 0.0
    %1027 = vmatpush1.msra.mxu0 0.0
    %1028 = vmatprep.subr.mxu0 0.0
    %1029 = vmatpush1.msra.mxu0 0.0
    %1030 = vmatprep.subr.mxu0 0.0
    %1031 = vmatpush1.msra.mxu0 0.0
    %1032 = vmatprep.subr.mxu0 0.0
    %1033 = vmatpush1.msra.mxu0 0.0
    %1034 = vmatprep.subr.mxu0 0.0
    %1035 = vmatpush1.msra.mxu0 0.0
    %1036 = vmatprep.subr.mxu0 0.0
    %1037 = vmatpush1.msra.mxu0 0.0
    %1038 = vmatprep.mubr.f32.mxu0 0.0
    %1039 = vmatmul.mubr.f32.gmra.mrb[0].mxu0 %v972
    %v1040 = vpop.f32.mrb[0].mxu0
    %v1041 = vadd.f32 0.0, %v1040
    %v1042 = vpop.f32.mrb[0].mxu0
    %1043 = vdwg.mxu0
    %v1045 = vrot.slane %v1041, 3
    %v1046 = vrot.slane %v1041, 4
    %v1049 = vadd.f32 %v272, %v1045
    %v1050 = vadd.f32 %v277, %v1046
    %v1051 = vxor.u32 %v1049, 2147483648
    %v1052 = vxor.u32 %v1050, 2147483648
    %v1053 = vmul.f32 %v1051, 1.442695
    %v1054 = vpow.pop %v1053
    %v1055 = vmul.f32 %v1052, 1.442695
    %v1056 = vpow.pop %v1055
    %v1057 = vadd.f32 %v1054, 1.0
    %v1058 = vadd.f32 %v1056, 1.0
    %v1059 = vrcp.pop %v1057
    %v1060 = vmul.f32 1.0, %v1059
    %v1061 = vrcp.pop %v1058
    %v1062 = vmul.f32 1.0, %v1061
    %v1063 = vtanh.pop %v1049
    %v1064 = vtanh.pop %v1050
    %v1067 = vrot.slane %v951, 7
    %v1068 = vrot.slane %v952, 7
    %v1071 = vmul.f32 %v1060, %v1067
    %v1072 = vmul.f32 %v1062, %v1068
    %1075 = vrot.lane.b32.xlu0 %v1063, 64
    %v1076 = vpop.permute.xlu0 %1075
    %1077 = vrot.lane.b32.xlu0 %v1064, 64
    %v1078 = vpop.permute.xlu0 %1077
    %v1081 = vmul.f32 %v1060, %v1076
    %v1082 = vmul.f32 %v1062, %v1078
    %1085 = vrot.lane.b32.xlu0 %v1081, 32
    %v1086 = vpop.permute.xlu0 %1085
    %1087 = vrot.lane.b32.xlu0 %v1082, 32
    %v1088 = vpop.permute.xlu0 %1087
    %v1091 = vadd.f32 %v1071, %v1086
    %v1092 = vadd.f32 %v1072, %v1088
    %v1093 = vtanh.pop %v1091
    %v1094 = vtanh.pop %v1092
    %1097 = vrot.lane.b32.xlu0 %v1093, 64
    %v1098 = vpop.permute.xlu0 %1097
    %1099 = vrot.lane.b32.xlu0 %v1094, 64
    %v1100 = vpop.permute.xlu0 %1099
    %v1103 = vmul.f32 %v1060, %v1098
    %v1104 = vmul.f32 %v1062, %v1100
    %v1107 = vrot.slane %v1103, 5
    %v1108 = vrot.slane %v1104, 4
    %v1109 = vsel %vm410, %v1108, %v1107
    %1110 = vrot.lane.b32.xlu0 %v1109, 32
    %v1111 = vpop.permute.xlu0 %1110
    %v1112 = vsel %vm198, %v1111, 0
    %1114 = vmatprep.subr.mxu0 0.0
    %1115 = vmatpush1.msra.mxu0 %v189
    %1116 = vmatprep.subr.mxu0 0.0
    %1117 = vmatpush1.msra.mxu0 %v190
    %1118 = vmatprep.subr.mxu0 0.0
    %1119 = vmatpush1.msra.mxu0 %v191
    %1120 = vmatprep.subr.mxu0 0.0
    %1121 = vmatpush1.msra.mxu0 %v192
    %1122 = vmatprep.subr.mxu0 0.0
    %1123 = vmatpush1.msra.mxu0 0.0
    %1124 = vmatprep.subr.mxu0 0.0
    %1125 = vmatpush1.msra.mxu0 0.0
    %1126 = vmatprep.subr.mxu0 0.0
    %1127 = vmatpush1.msra.mxu0 0.0
    %1128 = vmatprep.subr.mxu0 0.0
    %1129 = vmatpush1.msra.mxu0 0.0
    %1130 = vmatprep.subr.mxu0 0.0
    %1131 = vmatpush1.msra.mxu0 0.0
    %1132 = vmatprep.subr.mxu0 0.0
    %1133 = vmatpush1.msra.mxu0 0.0
    %1134 = vmatprep.subr.mxu0 0.0
    %1135 = vmatpush1.msra.mxu0 0.0
    %1136 = vmatprep.subr.mxu0 0.0
    %1137 = vmatpush1.msra.mxu0 0.0
    %1138 = vmatprep.subr.mxu0 0.0
    %1139 = vmatpush1.msra.mxu0 0.0
    %1140 = vmatprep.subr.mxu0 0.0
    %1141 = vmatpush1.msra.mxu0 0.0
    %1142 = vmatprep.subr.mxu0 0.0
    %1143 = vmatpush1.msra.mxu0 0.0
    %1144 = vmatprep.subr.mxu0 0.0
    %1145 = vmatpush1.msra.mxu0 0.0
    %1146 = vmatprep.subr.mxu0 0.0
    %1147 = vmatpush1.msra.mxu0 0.0
    %1148 = vmatprep.subr.mxu0 0.0
    %1149 = vmatpush1.msra.mxu0 0.0
    %1150 = vmatprep.subr.mxu0 0.0
    %1151 = vmatpush1.msra.mxu0 0.0
    %1152 = vmatprep.subr.mxu0 0.0
    %1153 = vmatpush1.msra.mxu0 0.0
    %1154 = vmatprep.subr.mxu0 0.0
    %1155 = vmatpush1.msra.mxu0 0.0
    %1156 = vmatprep.subr.mxu0 0.0
    %1157 = vmatpush1.msra.mxu0 0.0
    %1158 = vmatprep.subr.mxu0 0.0
    %1159 = vmatpush1.msra.mxu0 0.0
    %1160 = vmatprep.subr.mxu0 0.0
    %1161 = vmatpush1.msra.mxu0 0.0
    %1162 = vmatprep.subr.mxu0 0.0
    %1163 = vmatpush1.msra.mxu0 0.0
    %1164 = vmatprep.subr.mxu0 0.0
    %1165 = vmatpush1.msra.mxu0 0.0
    %1166 = vmatprep.subr.mxu0 0.0
    %1167 = vmatpush1.msra.mxu0 0.0
    %1168 = vmatprep.subr.mxu0 0.0
    %1169 = vmatpush1.msra.mxu0 0.0
    %1170 = vmatprep.subr.mxu0 0.0
    %1171 = vmatpush1.msra.mxu0 0.0
    %1172 = vmatprep.subr.mxu0 0.0
    %1173 = vmatpush1.msra.mxu0 0.0
    %1174 = vmatprep.subr.mxu0 0.0
    %1175 = vmatpush1.msra.mxu0 0.0
    %1176 = vmatprep.subr.mxu0 0.0
    %1177 = vmatpush1.msra.mxu0 0.0
    %1178 = vmatprep.mubr.f32.mxu0 0.0
    %1179 = vmatmul.mubr.f32.gmra.mrb[0].mxu0 %v1112
    %v1180 = vpop.f32.mrb[0].mxu0
    %v1181 = vadd.f32 0.0, %v1180
    %v1182 = vpop.f32.mrb[0].mxu0
    %1183 = vdwg.mxu0
    %v1185 = vrot.slane %v1181, 2
    %v1186 = vrot.slane %v1181, 3
    %v1189 = vadd.f32 %v272, %v1185
    %v1190 = vadd.f32 %v277, %v1186
    %v1191 = vxor.u32 %v1189, 2147483648
    %v1192 = vxor.u32 %v1190, 2147483648
    %v1193 = vmul.f32 %v1191, 1.442695
    %v1194 = vpow.pop %v1193
    %v1195 = vmul.f32 %v1192, 1.442695
    %v1196 = vpow.pop %v1195
    %v1197 = vadd.f32 %v1194, 1.0
    %v1198 = vadd.f32 %v1196, 1.0
    %v1199 = vrcp.pop %v1197
    %v1200 = vmul.f32 1.0, %v1199
    %v1201 = vrcp.pop %v1198
    %v1202 = vmul.f32 1.0, %v1201
    %v1203 = vtanh.pop %v1189
    %v1204 = vtanh.pop %v1190
    %v1207 = vrot.slane %v1091, 7
    %v1208 = vrot.slane %v1092, 7
    %v1211 = vmul.f32 %v1200, %v1207
    %v1212 = vmul.f32 %v1202, %v1208
    %1215 = vrot.lane.b32.xlu0 %v1203, 64
    %v1216 = vpop.permute.xlu0 %1215
    %1217 = vrot.lane.b32.xlu0 %v1204, 64
    %v1218 = vpop.permute.xlu0 %1217
    %v1221 = vmul.f32 %v1200, %v1216
    %v1222 = vmul.f32 %v1202, %v1218
    %1225 = vrot.lane.b32.xlu0 %v1221, 32
    %v1226 = vpop.permute.xlu0 %1225
    %1227 = vrot.lane.b32.xlu0 %v1222, 32
    %v1228 = vpop.permute.xlu0 %1227
    %v1231 = vadd.f32 %v1211, %v1226
    %v1232 = vadd.f32 %v1212, %v1228
    %v1233 = vtanh.pop %v1231
    %v1234 = vtanh.pop %v1232
    %1237 = vrot.lane.b32.xlu0 %v1233, 64
    %v1238 = vpop.permute.xlu0 %1237
    %1239 = vrot.lane.b32.xlu0 %v1234, 64
    %v1240 = vpop.permute.xlu0 %1239
    %v1243 = vmul.f32 %v1200, %v1238
    %v1244 = vmul.f32 %v1202, %v1240
    %v1247 = vrot.slane %v1243, 6
    %v1248 = vrot.slane %v1244, 5
    %v1249 = vsel %vm410, %v1248, %v1247
    %1250 = vrot.lane.b32.xlu0 %v1249, 32
    %v1251 = vpop.permute.xlu0 %1250
    %v1252 = vsel %vm198, %v1251, 0
    %1254 = vmatprep.subr.mxu0 0.0
    %1255 = vmatpush1.msra.mxu0 %v189
    %1256 = vmatprep.subr.mxu0 0.0
    %1257 = vmatpush1.msra.mxu0 %v190
    %1258 = vmatprep.subr.mxu0 0.0
    %1259 = vmatpush1.msra.mxu0 %v191
    %1260 = vmatprep.subr.mxu0 0.0
    %1261 = vmatpush1.msra.mxu0 %v192
    %1262 = vmatprep.subr.mxu0 0.0
    %1263 = vmatpush1.msra.mxu0 0.0
    %1264 = vmatprep.subr.mxu0 0.0
    %1265 = vmatpush1.msra.mxu0 0.0
    %1266 = vmatprep.subr.mxu0 0.0
    %1267 = vmatpush1.msra.mxu0 0.0
    %1268 = vmatprep.subr.mxu0 0.0
    %1269 = vmatpush1.msra.mxu0 0.0
    %1270 = vmatprep.subr.mxu0 0.0
    %1271 = vmatpush1.msra.mxu0 0.0
    %1272 = vmatprep.subr.mxu0 0.0
    %1273 = vmatpush1.msra.mxu0 0.0
    %1274 = vmatprep.subr.mxu0 0.0
    %1275 = vmatpush1.msra.mxu0 0.0
    %1276 = vmatprep.subr.mxu0 0.0
    %1277 = vmatpush1.msra.mxu0 0.0
    %1278 = vmatprep.subr.mxu0 0.0
    %1279 = vmatpush1.msra.mxu0 0.0
    %1280 = vmatprep.subr.mxu0 0.0
    %1281 = vmatpush1.msra.mxu0 0.0
    %1282 = vmatprep.subr.mxu0 0.0
    %1283 = vmatpush1.msra.mxu0 0.0
    %1284 = vmatprep.subr.mxu0 0.0
    %1285 = vmatpush1.msra.mxu0 0.0
    %1286 = vmatprep.subr.mxu0 0.0
    %1287 = vmatpush1.msra.mxu0 0.0
    %1288 = vmatprep.subr.mxu0 0.0
    %1289 = vmatpush1.msra.mxu0 0.0
    %1290 = vmatprep.subr.mxu0 0.0
    %1291 = vmatpush1.msra.mxu0 0.0
    %1292 = vmatprep.subr.mxu0 0.0
    %1293 = vmatpush1.msra.mxu0 0.0
    %1294 = vmatprep.subr.mxu0 0.0
    %1295 = vmatpush1.msra.mxu0 0.0
    %1296 = vmatprep.subr.mxu0 0.0
    %1297 = vmatpush1.msra.mxu0 0.0
    %1298 = vmatprep.subr.mxu0 0.0
    %1299 = vmatpush1.msra.mxu0 0.0
    %1300 = vmatprep.subr.mxu0 0.0
    %1301 = vmatpush1.msra.mxu0 0.0
    %1302 = vmatprep.subr.mxu0 0.0
    %1303 = vmatpush1.msra.mxu0 0.0
    %1304 = vmatprep.subr.mxu0 0.0
    %1305 = vmatpush1.msra.mxu0 0.0
    %1306 = vmatprep.subr.mxu0 0.0
    %1307 = vmatpush1.msra.mxu0 0.0
    %1308 = vmatprep.subr.mxu0 0.0
    %1309 = vmatpush1.msra.mxu0 0.0
    %1310 = vmatprep.subr.mxu0 0.0
    %1311 = vmatpush1.msra.mxu0 0.0
    %1312 = vmatprep.subr.mxu0 0.0
    %1313 = vmatpush1.msra.mxu0 0.0
    %1314 = vmatprep.subr.mxu0 0.0
    %1315 = vmatpush1.msra.mxu0 0.0
    %1316 = vmatprep.subr.mxu0 0.0
    %1317 = vmatpush1.msra.mxu0 0.0
    %1318 = vmatprep.mubr.f32.mxu0 0.0
    %1319 = vmatmul.mubr.f32.gmra.mrb[0].mxu0 %v1252
    %v1320 = vpop.f32.mrb[0].mxu0
    %v1321 = vadd.f32 0.0, %v1320
    %v1322 = vpop.f32.mrb[0].mxu0
    %1323 = vdwg.mxu0
    %v1325 = vrot.slane %v1321, 1
    %v1326 = vrot.slane %v1321, 2
    %v1329 = vadd.f32 %v272, %v1325
    %v1330 = vadd.f32 %v277, %v1326
    %v1331 = vxor.u32 %v1329, 2147483648
    %v1332 = vxor.u32 %v1330, 2147483648
    %v1333 = vmul.f32 %v1331, 1.442695
    %v1334 = vpow.pop %v1333
    %v1335 = vmul.f32 %v1332, 1.442695
    %v1336 = vpow.pop %v1335
    %v1337 = vadd.f32 %v1334, 1.0
    %v1338 = vadd.f32 %v1336, 1.0
    %v1339 = vrcp.pop %v1337
    %v1340 = vmul.f32 1.0, %v1339
    %v1341 = vrcp.pop %v1338
    %v1342 = vmul.f32 1.0, %v1341
    %v1343 = vtanh.pop %v1329
    %v1344 = vtanh.pop %v1330
    %v1347 = vrot.slane %v1231, 7
    %v1348 = vrot.slane %v1232, 7
    %v1351 = vmul.f32 %v1340, %v1347
    %v1352 = vmul.f32 %v1342, %v1348
    %1355 = vrot.lane.b32.xlu0 %v1343, 64
    %v1356 = vpop.permute.xlu0 %1355
    %1357 = vrot.lane.b32.xlu0 %v1344, 64
    %v1358 = vpop.permute.xlu0 %1357
    %v1361 = vmul.f32 %v1340, %v1356
    %v1362 = vmul.f32 %v1342, %v1358
    %1365 = vrot.lane.b32.xlu0 %v1361, 32
    %v1366 = vpop.permute.xlu0 %1365
    %1367 = vrot.lane.b32.xlu0 %v1362, 32
    %v1368 = vpop.permute.xlu0 %1367
    %v1371 = vadd.f32 %v1351, %v1366
    %v1372 = vadd.f32 %v1352, %v1368
    %v1373 = vtanh.pop %v1371
    %v1374 = vtanh.pop %v1372
    %1377 = vrot.lane.b32.xlu0 %v1373, 64
    %v1378 = vpop.permute.xlu0 %1377
    %1379 = vrot.lane.b32.xlu0 %v1374, 64
    %v1380 = vpop.permute.xlu0 %1379
    %v1383 = vmul.f32 %v1340, %v1378
    %v1384 = vmul.f32 %v1342, %v1380
    %vm1385 = vcmask 1040384
    %v1386 = vsel %vm1385, %v405, %v544
    %v1387 = vsel %vm1385, %v406, %v545
    %v1388 = vsel %vm106, %v1386, %v683
    %v1389 = vsel %vm106, %v1387, %v684
    %vm1390 = vcmask 1042432
    %v1391 = vsel %vm1390, %v1388, %v823
    %v1392 = vsel %vm1390, %v1389, %v824
    %vm1393 = vcmask 1043456
    %v1394 = vsel %vm1393, %v1391, %v963
    %v1395 = vsel %vm1393, %v1392, %v964
    %vm1396 = vcmask 1044480
    %v1397 = vsel %vm1396, %v1394, %v1103
    %v1398 = vsel %vm1396, %v1395, %v1104
    %vm1399 = vcmask 1045504
    %v1400 = vsel %vm1399, %v1397, %v1243
    %v1401 = vsel %vm1399, %v1398, %v1244
    %vm1402 = vcmask 1046528
    %v1403 = vsel %vm1402, %v1400, %v1383
    %v1404 = vsel %vm1402, %v1401, %v1384
    %v1405 = vld [vmem:[#allocation5 + $0x80] sm:$0xff]
    %v1406 = vld [vmem:[#allocation5 + $0x88] sm:$0xff]
    %v1407 = vld [vmem:[#allocation5 + $0x90] sm:$0xff]
    %v1408 = vld [vmem:[#allocation5 + $0x98] sm:$0xff]
    %v1409 = vld [vmem:[#allocation5 + $0xa0] sm:$0xff]
    %v1410 = vld [vmem:[#allocation5 + $0xa8] sm:$0xff]
    %v1411 = vld [vmem:[#allocation5 + $0xb0] sm:$0xff]
    %v1412 = vld [vmem:[#allocation5 + $0xb8] sm:$0xff]
    %v1413 = vld [vmem:[#allocation5 + $0xc0] sm:$0x1]
    %v1414 = vlaneseq
    %v1415 = vshrl.u32 %v1414, 7
    %v1416 = vsub.s32 0, %v1415
    %v1417 = vrot.slane %v1413, %v1416
    %v1419 = vsel %vm53, %v44, 0
    %v1422 = vsel %vm53, %v45, 0
    %v1425 = vsel %vm53, %v46, 0
    %v1428 = vsel %vm53, %v47, 0
    %1430 = vmatprep.subr.mxu0 0.0
    %1431 = vmatpush1.msra.mxu0 %v1405
    %1432 = vmatprep.subr.mxu0 0.0
    %1433 = vmatpush1.msra.mxu0 %v1406
    %1434 = vmatprep.subr.mxu0 0.0
    %1435 = vmatpush1.msra.mxu0 %v1407
    %1436 = vmatprep.subr.mxu0 0.0
    %1437 = vmatpush1.msra.mxu0 %v1408
    %1438 = vmatprep.subr.mxu0 0.0
    %1439 = vmatpush1.msra.mxu0 %v1409
    %1440 = vmatprep.subr.mxu0 0.0
    %1441 = vmatpush1.msra.mxu0 %v1410
    %1442 = vmatprep.subr.mxu0 0.0
    %1443 = vmatpush1.msra.mxu0 %v1411
    %1444 = vmatprep.subr.mxu0 0.0
    %1445 = vmatpush1.msra.mxu0 %v1412
    %1446 = vmatprep.subr.mxu0 0.0
    %1447 = vmatpush1.msra.mxu0 0.0
    %1448 = vmatprep.subr.mxu0 0.0
    %1449 = vmatpush1.msra.mxu0 0.0
    %1450 = vmatprep.subr.mxu0 0.0
    %1451 = vmatpush1.msra.mxu0 0.0
    %1452 = vmatprep.subr.mxu0 0.0
    %1453 = vmatpush1.msra.mxu0 0.0
    %1454 = vmatprep.subr.mxu0 0.0
    %1455 = vmatpush1.msra.mxu0 0.0
    %1456 = vmatprep.subr.mxu0 0.0
    %1457 = vmatpush1.msra.mxu0 0.0
    %1458 = vmatprep.subr.mxu0 0.0
    %1459 = vmatpush1.msra.mxu0 0.0
    %1460 = vmatprep.subr.mxu0 0.0
    %1461 = vmatpush1.msra.mxu0 0.0
    %1462 = vmatprep.subr.mxu0 0.0
    %1463 = vmatpush1.msra.mxu0 0.0
    %1464 = vmatprep.subr.mxu0 0.0
    %1465 = vmatpush1.msra.mxu0 0.0
    %1466 = vmatprep.subr.mxu0 0.0
    %1467 = vmatpush1.msra.mxu0 0.0
    %1468 = vmatprep.subr.mxu0 0.0
    %1469 = vmatpush1.msra.mxu0 0.0
    %1470 = vmatprep.subr.mxu0 0.0
    %1471 = vmatpush1.msra.mxu0 0.0
    %1472 = vmatprep.subr.mxu0 0.0
    %1473 = vmatpush1.msra.mxu0 0.0
    %1474 = vmatprep.subr.mxu0 0.0
    %1475 = vmatpush1.msra.mxu0 0.0
    %1476 = vmatprep.subr.mxu0 0.0
    %1477 = vmatpush1.msra.mxu0 0.0
    %1478 = vmatprep.subr.mxu0 0.0
    %1479 = vmatpush1.msra.mxu0 0.0
    %1480 = vmatprep.subr.mxu0 0.0
    %1481 = vmatpush1.msra.mxu0 0.0
    %1482 = vmatprep.subr.mxu0 0.0
    %1483 = vmatpush1.msra.mxu0 0.0
    %1484 = vmatprep.subr.mxu0 0.0
    %1485 = vmatpush1.msra.mxu0 0.0
    %1486 = vmatprep.subr.mxu0 0.0
    %1487 = vmatpush1.msra.mxu0 0.0
    %1488 = vmatprep.subr.mxu0 0.0
    %1489 = vmatpush1.msra.mxu0 0.0
    %1490 = vmatprep.subr.mxu0 0.0
    %1491 = vmatpush1.msra.mxu0 0.0
    %1492 = vmatprep.subr.mxu0 0.0
    %1493 = vmatpush1.msra.mxu0 0.0
    %1494 = vmatprep.mubr.f32.mxu0 0.0
    %1495 = vmatmul.mubr.f32.gmra.mrb[0].mxu0 %v1419
    %v1496 = vpop.f32.mrb[0].mxu0
    %v1497 = vadd.f32 %v1417, %v1496
    %v1498 = vpop.f32.mrb[0].mxu0
    %1499 = vmatprep.mubr.f32.mxu0 0.0
    %1500 = vmatmul.mubr.f32.gmra.mrb[0].mxu0 %v1422
    %v1501 = vpop.f32.mrb[0].mxu0
    %v1502 = vadd.f32 %v1417, %v1501
    %v1503 = vpop.f32.mrb[0].mxu0
    %1504 = vmatprep.mubr.f32.mxu0 0.0
    %1505 = vmatmul.mubr.f32.gmra.mrb[0].mxu0 %v1425
    %v1506 = vpop.f32.mrb[0].mxu0
    %v1507 = vadd.f32 %v1417, %v1506
    %v1508 = vpop.f32.mrb[0].mxu0
    %1509 = vmatprep.mubr.f32.mxu0 0.0
    %1510 = vmatmul.mubr.f32.gmra.mrb[0].mxu0 %v1428
    %v1511 = vpop.f32.mrb[0].mxu0
    %v1512 = vadd.f32 %v1417, %v1511
    %v1513 = vpop.f32.mrb[0].mxu0
    %1514 = vdwg.mxu0
    %1519 = vrot.lane.b32.xlu0 %v1497, 96
    %v1520 = vpop.permute.xlu0 %1519
    %1521 = vrot.lane.b32.xlu0 %v1502, 96
    %v1522 = vpop.permute.xlu0 %1521
    %1523 = vrot.lane.b32.xlu0 %v1507, 96
    %v1524 = vpop.permute.xlu0 %1523
    %1525 = vrot.lane.b32.xlu0 %v1512, 96
    %v1526 = vpop.permute.xlu0 %1525
    %v1527 = vld [vmem:[#allocation5 + $0xc8] sm:$0xff]
    %v1528 = vld [vmem:[#allocation5 + $0xd0] sm:$0xff]
    %v1529 = vld [vmem:[#allocation5 + $0xd8] sm:$0xff]
    %v1530 = vld [vmem:[#allocation5 + $0xe0] sm:$0xff]
    %v1531 = vld [vmem:[#allocation5 + $0xe8] sm:$0x1]
    %v1532 = vlaneseq
    %v1533 = vshrl.u32 %v1532, 7
    %v1534 = vsub.s32 0, %v1533
    %v1535 = vrot.slane %v1531, %v1534
    %1538 = vrot.lane.b32.xlu0 %v1403, 32
    %v1539 = vpop.permute.xlu0 %1538
    %1540 = vrot.lane.b32.xlu0 %v1404, 32
    %v1541 = vpop.permute.xlu0 %1540
    %1542 = vrot.lane.b32.xlu0 %v1520, 32
    %v1543 = vpop.permute.xlu0 %1542
    %1544 = vrot.lane.b32.xlu0 %v1522, 32
    %v1545 = vpop.permute.xlu0 %1544
    %1546 = vrot.lane.b32.xlu0 %v1524, 32
    %v1547 = vpop.permute.xlu0 %1546
    %1548 = vrot.lane.b32.xlu0 %v1526, 32
    %v1549 = vpop.permute.xlu0 %1548
    %v1550 = vsel %vm198, %v1539, 0
    %v1552 = vsel %vm198, %v1541, 0
    %v1554 = vsel %vm198, %v1543, 0
    %v1556 = vsel %vm198, %v1545, 0
    %v1558 = vsel %vm198, %v1547, 0
    %v1560 = vsel %vm198, %v1549, 0
    %1562 = vmatprep.subr.mxu0 0.0
    %1563 = vmatpush1.msra.mxu0 %v1527
    %1564 = vmatprep.subr.mxu0 0.0
    %1565 = vmatpush1.msra.mxu0 %v1528
    %1566 = vmatprep.subr.mxu0 0.0
    %1567 = vmatpush1.msra.mxu0 %v1529
    %1568 = vmatprep.subr.mxu0 0.0
    %1569 = vmatpush1.msra.mxu0 %v1530
    %1570 = vmatprep.subr.mxu0 0.0
    %1571 = vmatpush1.msra.mxu0 0.0
    %1572 = vmatprep.subr.mxu0 0.0
    %1573 = vmatpush1.msra.mxu0 0.0
    %1574 = vmatprep.subr.mxu0 0.0
    %1575 = vmatpush1.msra.mxu0 0.0
    %1576 = vmatprep.subr.mxu0 0.0
    %1577 = vmatpush1.msra.mxu0 0.0
    %1578 = vmatprep.subr.mxu0 0.0
    %1579 = vmatpush1.msra.mxu0 0.0
    %1580 = vmatprep.subr.mxu0 0.0
    %1581 = vmatpush1.msra.mxu0 0.0
    %1582 = vmatprep.subr.mxu0 0.0
    %1583 = vmatpush1.msra.mxu0 0.0
    %1584 = vmatprep.subr.mxu0 0.0
    %1585 = vmatpush1.msra.mxu0 0.0
    %1586 = vmatprep.subr.mxu0 0.0
    %1587 = vmatpush1.msra.mxu0 0.0
    %1588 = vmatprep.subr.mxu0 0.0
    %1589 = vmatpush1.msra.mxu0 0.0
    %1590 = vmatprep.subr.mxu0 0.0
    %1591 = vmatpush1.msra.mxu0 0.0
    %1592 = vmatprep.subr.mxu0 0.0
    %1593 = vmatpush1.msra.mxu0 0.0
    %1594 = vmatprep.subr.mxu0 0.0
    %1595 = vmatpush1.msra.mxu0 0.0
    %1596 = vmatprep.subr.mxu0 0.0
    %1597 = vmatpush1.msra.mxu0 0.0
    %1598 = vmatprep.subr.mxu0 0.0
    %1599 = vmatpush1.msra.mxu0 0.0
    %1600 = vmatprep.subr.mxu0 0.0
    %1601 = vmatpush1.msra.mxu0 0.0
    %1602 = vmatprep.subr.mxu0 0.0
    %1603 = vmatpush1.msra.mxu0 0.0
    %1604 = vmatprep.subr.mxu0 0.0
    %1605 = vmatpush1.msra.mxu0 0.0
    %1606 = vmatprep.subr.mxu0 0.0
    %1607 = vmatpush1.msra.mxu0 0.0
    %1608 = vmatprep.subr.mxu0 0.0
    %1609 = vmatpush1.msra.mxu0 0.0
    %1610 = vmatprep.subr.mxu0 0.0
    %1611 = vmatpush1.msra.mxu0 0.0
    %1612 = vmatprep.subr.mxu0 0.0
    %1613 = vmatpush1.msra.mxu0 0.0
    %1614 = vmatprep.subr.mxu0 0.0
    %1615 = vmatpush1.msra.mxu0 0.0
    %1616 = vmatprep.subr.mxu0 0.0
    %1617 = vmatpush1.msra.mxu0 0.0
    %1618 = vmatprep.subr.mxu0 0.0
    %1619 = vmatpush1.msra.mxu0 0.0
    %1620 = vmatprep.subr.mxu0 0.0
    %1621 = vmatpush1.msra.mxu0 0.0
    %1622 = vmatprep.subr.mxu0 0.0
    %1623 = vmatpush1.msra.mxu0 0.0
    %1624 = vmatprep.subr.mxu0 0.0
    %1625 = vmatpush1.msra.mxu0 0.0
    %1626 = vmatprep.mubr.f32.mxu0 0.0
    %1627 = vmatmul.mubr.f32.gmra.mrb[0].mxu0 %v1550
    %v1628 = vpop.f32.mrb[0].mxu0
    %v1629 = vadd.f32 %v1535, %v1628
    %v1630 = vpop.f32.mrb[0].mxu0
    %1631 = vmatprep.mubr.f32.mxu0 0.0
    %1632 = vmatmul.mubr.f32.gmra.mrb[0].mxu0 %v1552
    %v1633 = vpop.f32.mrb[0].mxu0
    %v1634 = vadd.f32 %v1535, %v1633
    %v1635 = vpop.f32.mrb[0].mxu0
    %1636 = vmatprep.mubr.f32.mxu0 0.0
    %1637 = vmatmul.mubr.f32.gmra.mrb[0].mxu0 %v1554
    %v1638 = vpop.f32.mrb[0].mxu0
    %v1639 = vadd.f32 %v1535, %v1638
    %v1640 = vpop.f32.mrb[0].mxu0
    %1641 = vmatprep.mubr.f32.mxu0 0.0
    %1642 = vmatmul.mubr.f32.gmra.mrb[0].mxu0 %v1556
    %v1643 = vpop.f32.mrb[0].mxu0
    %v1644 = vadd.f32 %v1535, %v1643
    %v1645 = vpop.f32.mrb[0].mxu0
    %1646 = vmatprep.mubr.f32.mxu0 0.0
    %1647 = vmatmul.mubr.f32.gmra.mrb[0].mxu0 %v1558
    %v1648 = vpop.f32.mrb[0].mxu0
    %v1649 = vadd.f32 %v1535, %v1648
    %v1650 = vpop.f32.mrb[0].mxu0
    %1651 = vmatprep.mubr.f32.mxu0 0.0
    %1652 = vmatmul.mubr.f32.gmra.mrb[0].mxu0 %v1560
    %v1653 = vpop.f32.mrb[0].mxu0
    %v1654 = vadd.f32 %v1535, %v1653
    %v1655 = vpop.f32.mrb[0].mxu0
    %1656 = vdwg.mxu0
    %v1657 = vmax.f32 %v1629, 0.0
    %v1658 = vmax.f32 %v1634, 0.0
    %v1659 = vmax.f32 %v1639, 0.0
    %v1660 = vmax.f32 %v1644, 0.0
    %v1661 = vmax.f32 %v1649, 0.0
    %v1662 = vmax.f32 %v1654, 0.0
    %v1663 = vld [vmem:[#allocation5 + $0xf0] sm:$0x1]
    %v1664 = vld [vmem:[#allocation5 + $0xf8] sm:$0x1]
    %v1665 = vlaneseq
    %v1666 = vshrl.u32 %v1665, 7
    %v1667 = vsub.s32 0, %v1666
    %v1668 = vrot.slane %v1663, %v1667
    %v1669 = vmul.f32 %v1657, %v1668
    %v1670 = vmul.f32 %v1658, %v1668
    %v1671 = vsel %vm198, %v1669, 0.0
    %1672 = vadd.xlane.f32.xlu0 %v1671
    %v1673 = vpop.xlane.xlu0 %1672
    %v1674 = vsel %vm198, %v1670, 0.0
    %1675 = vadd.xlane.f32.xlu0 %v1674
    %v1676 = vpop.xlane.xlu0 %1675
    %s1678 = vtos %v1664
    %v1679 = vstv %s1678
    %v1681 = vadd.f32 %v1673, %v1679
    %v1682 = vadd.f32 %v1676, %v1679
    %v1685 = vlaneseq
    %v1686 = vshrl.u32 %v1685, 7
    %v1687 = vsub.s32 %v78, %v1686
    %v1688 = vrot.slane %v1681, %v1687
    %v1689 = vlaneseq
    %v1690 = vshrl.u32 %v1689, 7
    %v1691 = vsub.s32 %v78, %v1690
    %v1692 = vrot.slane %v1682, %v1691
    %v1693 = vsel %vm410, %v1692, %v1688
    %v1695 = vsel %vm48, -1e+09, %v1693
    %vm1696 = vcmask 58368
    %v1697 = vsel %vm1696, %v1695, -inf
    %1698 = vmax.xlane.f32.xlu0 %v1697
    %v1699 = vpop.xlane.xlu0 %1698
    %v1700 = vsub.f32 %v1695, %v1699
    %v1701 = vmul.f32 %v1700, 1.442695
    %v1702 = vpow.pop %v1701
    %v1703 = vsel %vm1696, %v1702, 0.0
    %1704 = vadd.xlane.f32.xlu0 %v1703
    %v1705 = vpop.xlane.xlu0 %1704
    %v1706 = vrcp.pop %v1705
    %v1707 = vmul.f32 %v1702, %v1706
    %v1708 = vlaneseq
    %v1709 = vshrl.u32 %v1708, 7
    %v1710 = vsub.s32 0, %v1709
    %v1711 = vrot.slane %v1707, %v1710
    %1713 = vbcast.lane.b32.xlu0 %v1711, 256
    %v1714 = vpop.permute.xlu0 %1713
    %v1715 = vlaneseq
    %v1716 = vshrl.u32 %v1715, 7
    %v1717 = vsub.s32 1, %v1716
    %v1718 = vrot.slane %v1707, %v1717
    %1720 = vbcast.lane.b32.xlu0 %v1718, 256
    %v1721 = vpop.permute.xlu0 %1720
    %v1722 = vmul.f32 %v1714, %v1403
    %v1723 = vmul.f32 %v1721, %v1404
    %vm1724 = vcmask 1048320
    %v1725 = vsel %vm1724, %v1722, 0.0
    %v1726 = vrot.slane %v1725, 4
    %v1727 = vadd.f32 %v1725, %v1726
    %v1728 = vrot.slane %v1727, 2
    %v1729 = vadd.f32 %v1727, %v1728
    %v1730 = vrot.slane %v1729, 1
    %v1731 = vadd.f32 %v1729, %v1730
    %v1732 = vsel %vm1724, %v1723, 0.0
    %v1733 = vrot.slane %v1732, 4
    %v1734 = vadd.f32 %v1732, %v1733
    %v1735 = vrot.slane %v1734, 2
    %v1736 = vadd.f32 %v1734, %v1735
    %v1737 = vrot.slane %v1736, 1
    %v1738 = vadd.f32 %v1736, %v1737
    %v1739 = vmul.f32 %v1659, %v1668
    %v1740 = vmul.f32 %v1660, %v1668
    %v1741 = vmul.f32 %v1661, %v1668
    %v1742 = vmul.f32 %v1662, %v1668
    %1747 = vrot.lane.b32.xlu0 %v1739, 96
    %v1748 = vpop.permute.xlu0 %1747
    %1749 = vrot.lane.b32.xlu0 %v1740, 96
    %v1750 = vpop.permute.xlu0 %1749
    %1751 = vrot.lane.b32.xlu0 %v1741, 96
    %v1752 = vpop.permute.xlu0 %1751
    %1753 = vrot.lane.b32.xlu0 %v1742, 96
    %v1754 = vpop.permute.xlu0 %1753
    %v1759 = vsel %vm198, %v1748, 0.0
    %1760 = vadd.xlane.f32.xlu0 %v1759
    %v1761 = vpop.xlane.xlu0 %1760
    %v1762 = vsel %vm198, %v1750, 0.0
    %1763 = vadd.xlane.f32.xlu0 %v1762
    %v1764 = vpop.xlane.xlu0 %1763
    %v1765 = vsel %vm198, %v1752, 0.0
    %1766 = vadd.xlane.f32.xlu0 %v1765
    %v1767 = vpop.xlane.xlu0 %1766
    %v1768 = vsel %vm198, %v1754, 0.0
    %1769 = vadd.xlane.f32.xlu0 %v1768
    %v1770 = vpop.xlane.xlu0 %1769
    %1771 = vrot.lane.b32.xlu0 %v1664, 127
    %v1772 = vpop.permute.xlu0 %1771
    %s1773 = vtos %v1772
    %v1774 = vstv %s1773
    %v1776 = vadd.f32 %v1761, %v1774
    %v1777 = vadd.f32 %v1764, %v1774
    %v1778 = vadd.f32 %v1767, %v1774
    %v1779 = vadd.f32 %v1770, %v1774
    %v1780 = vsel %vm66, -1e+09, %v1776
    %v1781 = vsel %vm67, -1e+09, %v1777
    %v1782 = vsel %vm68, -1e+09, %v1778
    %v1783 = vsel %vm69, -1e+09, %v1779
    %v1788 = vlaneseq
    %v1789 = vshrl.u32 %v1788, 7
    %v1790 = vsub.s32 %v78, %v1789
    %v1791 = vrot.slane %v1780, %v1790
    %v1792 = vadd.s32 %v78, 4294967288
    %v1793 = vlaneseq
    %v1794 = vshrl.u32 %v1793, 7
    %v1795 = vsub.s32 %v1792, %v1794
    %v1796 = vrot.slane %v1781, %v1795
    %vm1797 = vcmask 130112
    %v1798 = vsel %vm1797, %v1796, %v1791
    %v1799 = vlaneseq
    %v1800 = vshrl.u32 %v1799, 7
    %v1801 = vsub.s32 %v78, %v1800
    %v1802 = vrot.slane %v1782, %v1801
    %v1803 = vlaneseq
    %v1804 = vshrl.u32 %v1803, 7
    %v1805 = vsub.s32 %v1792, %v1804
    %v1806 = vrot.slane %v1783, %v1805
    %v1807 = vsel %vm1797, %v1806, %v1802
    %v1808 = vsel %vm410, %v1807, %v1798
    %vm1810 = vcmask 123904
    %v1811 = vsel %vm1810, %v1808, -inf
    %1812 = vmax.xlane.f32.xlu0 %v1811
    %v1813 = vpop.xlane.xlu0 %1812
    %v1815 = vlaneseq
    %v1816 = vshrl.u32 %v1815, 7
    %v1817 = vsub.s32 0, %v1816
    %v1818 = vrot.slane %v1813, %v1817
    %v1819 = vlaneseq
    %v1820 = vshrl.u32 %v1819, 7
    %v1821 = vsub.s32 1, %v1820
    %v1822 = vrot.slane %v1813, %v1821
    %v1825 = vsub.f32 %v1780, %v1818
    %v1826 = vsub.f32 %v1781, %v1818
    %v1827 = vsub.f32 %v1782, %v1822
    %v1828 = vsub.f32 %v1783, %v1822
    %v1829 = vmul.f32 %v1825, 1.442695
    %v1830 = vpow.pop %v1829
    %v1831 = vmul.f32 %v1826, 1.442695
    %v1832 = vpow.pop %v1831
    %v1833 = vmul.f32 %v1827, 1.442695
    %v1834 = vpow.pop %v1833
    %v1835 = vmul.f32 %v1828, 1.442695
    %v1836 = vpow.pop %v1835
    %1841 = vset.pattern.permute.xlu0 0
    %1842 = vperm.xlu0 %1841, %v1830
    %v1843 = vpop.permute.xlu0 %1842
    %1844 = vset.pattern.permute.xlu0 0
    %1845 = vperm.xlu0 %1844, %v1832
    %v1846 = vpop.permute.xlu0 %1845
    %1847 = vset.pattern.permute.xlu0 0
    %1848 = vperm.xlu0 %1847, %v1834
    %v1849 = vpop.permute.xlu0 %1848
    %1850 = vset.pattern.permute.xlu0 0
    %1851 = vperm.xlu0 %1850, %v1836
    %v1852 = vpop.permute.xlu0 %1851
    %v1853 = vlaneseq
    %v1854 = vshrl.u32 %v1853, 7
    %v1855 = vsub.s32 %v78, %v1854
    %v1856 = vrot.slane %v1843, %v1855
    %v1857 = vlaneseq
    %v1858 = vshrl.u32 %v1857, 7
    %v1859 = vsub.s32 %v1792, %v1858
    %v1860 = vrot.slane %v1846, %v1859
    %v1861 = vsel %vm1797, %v1860, %v1856
    %v1862 = vlaneseq
    %v1863 = vshrl.u32 %v1862, 7
    %v1864 = vsub.s32 %v78, %v1863
    %v1865 = vrot.slane %v1849, %v1864
    %v1866 = vlaneseq
    %v1867 = vshrl.u32 %v1866, 7
    %v1868 = vsub.s32 %v1792, %v1867
    %v1869 = vrot.slane %v1852, %v1868
    %v1870 = vsel %vm1797, %v1869, %v1865
    %v1871 = vsel %vm410, %v1870, %v1861
    %v1873 = vsel %vm1810, %v1871, 0.0
    %1874 = vadd.xlane.f32.xlu0 %v1873
    %v1875 = vpop.xlane.xlu0 %1874
    %v1876 = vrcp.pop %v1875
    %v1878 = vlaneseq
    %v1879 = vshrl.u32 %v1878, 7
    %v1880 = vsub.s32 0, %v1879
    %v1881 = vrot.slane %v1876, %v1880
    %v1882 = vlaneseq
    %v1883 = vshrl.u32 %v1882, 7
    %v1884 = vsub.s32 1, %v1883
    %v1885 = vrot.slane %v1876, %v1884
    %v1888 = vmul.f32 %v1830, %v1881
    %v1889 = vmul.f32 %v1832, %v1881
    %v1890 = vmul.f32 %v1834, %v1885
    %v1891 = vmul.f32 %v1836, %v1885
    %1893 = vset.pattern.permute.xlu0 0
    %1894 = vperm.xlu0 %1893, %v1888
    %v1895 = vpop.permute.xlu0 %1894
    %1898 = vset.pattern.permute.xlu0 0
    %1899 = vperm.xlu0 %1898, %v1889
    %v1900 = vpop.permute.xlu0 %1899
    %1903 = vset.pattern.permute.xlu0 0
    %1904 = vperm.xlu0 %1903, %v1890
    %v1905 = vpop.permute.xlu0 %1904
    %1908 = vset.pattern.permute.xlu0 0
    %1909 = vperm.xlu0 %1908, %v1891
    %v1910 = vpop.permute.xlu0 %1909
    %v1912 = vmul.f32 %v1895, %v1497
    %v1913 = vmul.f32 %v1900, %v1502
    %v1914 = vmul.f32 %v1905, %v1507
    %v1915 = vmul.f32 %v1910, %v1512
    %v1916 = vsel %vm198, %v1912, 0.0
    %v1917 = vsel %vm198, %v1913, 0.0
    %v1918 = vadd.f32 %v1916, %v1917
    %v1919 = vrot.slane %v1918, 4
    %v1920 = vadd.f32 %v1918, %v1919
    %v1921 = vrot.slane %v1920, 2
    %v1922 = vadd.f32 %v1920, %v1921
    %v1923 = vrot.slane %v1922, 1
    %v1924 = vadd.f32 %v1922, %v1923
    %v1925 = vsel %vm198, %v1914, 0.0
    %v1926 = vsel %vm198, %v1915, 0.0
    %v1927 = vadd.f32 %v1925, %v1926
    %v1928 = vrot.slane %v1927, 4
    %v1929 = vadd.f32 %v1927, %v1928
    %v1930 = vrot.slane %v1929, 2
    %v1931 = vadd.f32 %v1929, %v1930
    %v1932 = vrot.slane %v1931, 1
    %v1933 = vadd.f32 %v1931, %v1932
    %v1936 = vsel %vm410, %v1738, %v1731
    %1937 = vrot.lane.b32.xlu0 %v1936, 32
    %v1938 = vpop.permute.xlu0 %1937
    %v1942 = vsel %vm410, %v1933, %v1924
    %1943 = vrot.lane.b32.xlu0 %v1942, 32
    %v1944 = vpop.permute.xlu0 %1943
    %v1946 = vsel %vm198, %v1938, %v1944
    %v1947 = vld [vmem:[#allocation5 + $0x100] sm:$0xff]
    %v1948 = vld [vmem:[#allocation5 + $0x108] sm:$0xff]
    %v1949 = vld [vmem:[#allocation5 + $0x110] sm:$0xff]
    %v1950 = vld [vmem:[#allocation5 + $0x118] sm:$0xff]
    %v1951 = vld [vmem:[#allocation5 + $0x120] sm:$0xff]
    %v1952 = vld [vmem:[#allocation5 + $0x128] sm:$0xff]
    %v1953 = vld [vmem:[#allocation5 + $0x130] sm:$0xff]
    %v1954 = vld [vmem:[#allocation5 + $0x138] sm:$0xff]
    %v1955 = vld [vmem:[#allocation5 + $0x140] sm:$0x1]
    %v1956 = vlaneseq
    %v1957 = vshrl.u32 %v1956, 7
    %v1958 = vsub.s32 0, %v1957
    %v1959 = vrot.slane %v1955, %v1958
    %v1961 = vsel %vm53, %v1946, 0
    %1963 = vmatprep.subr.mxu0 0.0
    %1964 = vmatpush1.msra.mxu0 %v1947
    %1965 = vmatprep.subr.mxu0 0.0
    %1966 = vmatpush1.msra.mxu0 %v1948
    %1967 = vmatprep.subr.mxu0 0.0
    %1968 = vmatpush1.msra.mxu0 %v1949
    %1969 = vmatprep.subr.mxu0 0.0
    %1970 = vmatpush1.msra.mxu0 %v1950
    %1971 = vmatprep.subr.mxu0 0.0
    %1972 = vmatpush1.msra.mxu0 %v1951
    %1973 = vmatprep.subr.mxu0 0.0
    %1974 = vmatpush1.msra.mxu0 %v1952
    %1975 = vmatprep.subr.mxu0 0.0
    %1976 = vmatpush1.msra.mxu0 %v1953
    %1977 = vmatprep.subr.mxu0 0.0
    %1978 = vmatpush1.msra.mxu0 %v1954
    %1979 = vmatprep.subr.mxu0 0.0
    %1980 = vmatpush1.msra.mxu0 0.0
    %1981 = vmatprep.subr.mxu0 0.0
    %1982 = vmatpush1.msra.mxu0 0.0
    %1983 = vmatprep.subr.mxu0 0.0
    %1984 = vmatpush1.msra.mxu0 0.0
    %1985 = vmatprep.subr.mxu0 0.0
    %1986 = vmatpush1.msra.mxu0 0.0
    %1987 = vmatprep.subr.mxu0 0.0
    %1988 = vmatpush1.msra.mxu0 0.0
    %1989 = vmatprep.subr.mxu0 0.0
    %1990 = vmatpush1.msra.mxu0 0.0
    %1991 = vmatprep.subr.mxu0 0.0
    %1992 = vmatpush1.msra.mxu0 0.0
    %1993 = vmatprep.subr.mxu0 0.0
    %1994 = vmatpush1.msra.mxu0 0.0
    %1995 = vmatprep.subr.mxu0 0.0
    %1996 = vmatpush1.msra.mxu0 0.0
    %1997 = vmatprep.subr.mxu0 0.0
    %1998 = vmatpush1.msra.mxu0 0.0
    %1999 = vmatprep.subr.mxu0 0.0
    %2000 = vmatpush1.msra.mxu0 0.0
    %2001 = vmatprep.subr.mxu0 0.0
    %2002 = vmatpush1.msra.mxu0 0.0
    %2003 = vmatprep.subr.mxu0 0.0
    %2004 = vmatpush1.msra.mxu0 0.0
    %2005 = vmatprep.subr.mxu0 0.0
    %2006 = vmatpush1.msra.mxu0 0.0
    %2007 = vmatprep.subr.mxu0 0.0
    %2008 = vmatpush1.msra.mxu0 0.0
    %2009 = vmatprep.subr.mxu0 0.0
    %2010 = vmatpush1.msra.mxu0 0.0
    %2011 = vmatprep.subr.mxu0 0.0
    %2012 = vmatpush1.msra.mxu0 0.0
    %2013 = vmatprep.subr.mxu0 0.0
    %2014 = vmatpush1.msra.mxu0 0.0
    %2015 = vmatprep.subr.mxu0 0.0
    %2016 = vmatpush1.msra.mxu0 0.0
    %2017 = vmatprep.subr.mxu0 0.0
    %2018 = vmatpush1.msra.mxu0 0.0
    %2019 = vmatprep.subr.mxu0 0.0
    %2020 = vmatpush1.msra.mxu0 0.0
    %2021 = vmatprep.subr.mxu0 0.0
    %2022 = vmatpush1.msra.mxu0 0.0
    %2023 = vmatprep.subr.mxu0 0.0
    %2024 = vmatpush1.msra.mxu0 0.0
    %2025 = vmatprep.subr.mxu0 0.0
    %2026 = vmatpush1.msra.mxu0 0.0
    %2027 = vmatprep.mubr.f32.mxu0 0.0
    %2028 = vmatmul.mubr.f32.gmra.mrb[0].mxu0 %v1961
    %v2029 = vpop.f32.mrb[0].mxu0
    %v2030 = vadd.f32 %v1959, %v2029
    %v2031 = vpop.f32.mrb[0].mxu0
    %2032 = vdwg.mxu0
    %v2033 = vld [vmem:[#allocation5 + $0x148] sm:$0x1]
    %v2034 = vld [vmem:[#allocation5 + $0x150] sm:$0x1]
    %v2035 = vld [vmem:[#allocation5 + $0x158] sm:$0xff]
    %v2036 = vld [vmem:[#allocation5 + $0x160] sm:$0xff]
    %v2037 = vld [vmem:[#allocation5 + $0x168] sm:$0xff]
    %v2038 = vld [vmem:[#allocation5 + $0x170] sm:$0xff]
    %v2039 = vld [vmem:[#allocation5 + $0x178] sm:$0xff]
    %v2040 = vld [vmem:[#allocation5 + $0x180] sm:$0xff]
    %v2041 = vld [vmem:[#allocation5 + $0x188] sm:$0xff]
    %v2042 = vld [vmem:[#allocation5 + $0x190] sm:$0xff]
    %v2043 = vld [vmem:[#allocation5 + $0x198] sm:$0x1]
    %vm2044 = vcmask 517120
    %v2045 = vsel %vm2044, %v2030, 0.0
    %2046 = vadd.xlane.f32.xlu0 %v2045
    %v2047 = vpop.xlane.xlu0 %2046
    %v2048 = vrcp.pop 64.0
    %v2049 = vmul.f32 %v2047, %v2048
    %v2050 = vsub.f32 %v2030, %v2049
    %v2051 = vmul.f32 %v2050, %v2050
    %v2052 = vsel %vm2044, %v2051, 0.0
    %2053 = vadd.xlane.f32.xlu0 %v2052
    %v2054 = vpop.xlane.xlu0 %2053
    %v2055 = vmul.f32 %v2054, %v2048
    %v2056 = vadd.f32 %v2055, 1e-06
    %v2057 = vrsqrt.pop %v2056
    %v2058 = vmul.f32 %v2050, %v2057
    %v2059 = vlaneseq
    %v2060 = vshrl.u32 %v2059, 7
    %v2061 = vsub.s32 0, %v2060
    %v2062 = vrot.slane %v2033, %v2061
    %v2063 = vmul.f32 %v2058, %v2062
    %v2064 = vlaneseq
    %v2065 = vshrl.u32 %v2064, 7
    %v2066 = vsub.s32 0, %v2065
    %v2067 = vrot.slane %v2034, %v2066
    %v2068 = vadd.f32 %v2063, %v2067
    %v2069 = vlaneseq
    %v2070 = vshrl.u32 %v2069, 7
    %v2071 = vsub.s32 0, %v2070
    %v2072 = vrot.slane %v2043, %v2071
    %v2074 = vsel %vm53, %v2068, 0
    %2076 = vmatprep.subr.mxu0 0.0
    %2077 = vmatpush1.msra.mxu0 %v2035
    %2078 = vmatprep.subr.mxu0 0.0
    %2079 = vmatpush1.msra.mxu0 %v2036
    %2080 = vmatprep.subr.mxu0 0.0
    %2081 = vmatpush1.msra.mxu0 %v2037
    %2082 = vmatprep.subr.mxu0 0.0
    %2083 = vmatpush1.msra.mxu0 %v2038
    %2084 = vmatprep.subr.mxu0 0.0
    %2085 = vmatpush1.msra.mxu0 %v2039
    %2086 = vmatprep.subr.mxu0 0.0
    %2087 = vmatpush1.msra.mxu0 %v2040
    %2088 = vmatprep.subr.mxu0 0.0
    %2089 = vmatpush1.msra.mxu0 %v2041
    %2090 = vmatprep.subr.mxu0 0.0
    %2091 = vmatpush1.msra.mxu0 %v2042
    %2092 = vmatprep.subr.mxu0 0.0
    %2093 = vmatpush1.msra.mxu0 0.0
    %2094 = vmatprep.subr.mxu0 0.0
    %2095 = vmatpush1.msra.mxu0 0.0
    %2096 = vmatprep.subr.mxu0 0.0
    %2097 = vmatpush1.msra.mxu0 0.0
    %2098 = vmatprep.subr.mxu0 0.0
    %2099 = vmatpush1.msra.mxu0 0.0
    %2100 = vmatprep.subr.mxu0 0.0
    %2101 = vmatpush1.msra.mxu0 0.0
    %2102 = vmatprep.subr.mxu0 0.0
    %2103 = vmatpush1.msra.mxu0 0.0
    %2104 = vmatprep.subr.mxu0 0.0
    %2105 = vmatpush1.msra.mxu0 0.0
    %2106 = vmatprep.subr.mxu0 0.0
    %2107 = vmatpush1.msra.mxu0 0.0
    %2108 = vmatprep.subr.mxu0 0.0
    %2109 = vmatpush1.msra.mxu0 0.0
    %2110 = vmatprep.subr.mxu0 0.0
    %2111 = vmatpush1.msra.mxu0 0.0
    %2112 = vmatprep.subr.mxu0 0.0
    %2113 = vmatpush1.msra.mxu0 0.0
    %2114 = vmatprep.subr.mxu0 0.0
    %2115 = vmatpush1.msra.mxu0 0.0
    %2116 = vmatprep.subr.mxu0 0.0
    %2117 = vmatpush1.msra.mxu0 0.0
    %2118 = vmatprep.subr.mxu0 0.0
    %2119 = vmatpush1.msra.mxu0 0.0
    %2120 = vmatprep.subr.mxu0 0.0
    %2121 = vmatpush1.msra.mxu0 0.0
    %2122 = vmatprep.subr.mxu0 0.0
    %2123 = vmatpush1.msra.mxu0 0.0
    %2124 = vmatprep.subr.mxu0 0.0
    %2125 = vmatpush1.msra.mxu0 0.0
    %2126 = vmatprep.subr.mxu0 0.0
    %2127 = vmatpush1.msra.mxu0 0.0
    %2128 = vmatprep.subr.mxu0 0.0
    %2129 = vmatpush1.msra.mxu0 0.0
    %2130 = vmatprep.subr.mxu0 0.0
    %2131 = vmatpush1.msra.mxu0 0.0
    %2132 = vmatprep.subr.mxu0 0.0
    %2133 = vmatpush1.msra.mxu0 0.0
    %2134 = vmatprep.subr.mxu0 0.0
    %2135 = vmatpush1.msra.mxu0 0.0
    %2136 = vmatprep.subr.mxu0 0.0
    %2137 = vmatpush1.msra.mxu0 0.0
    %2138 = vmatprep.subr.mxu0 0.0
    %2139 = vmatpush1.msra.mxu0 0.0
    %2140 = vmatprep.mubr.f32.mxu0 0.0
    %2141 = vmatmul.mubr.f32.gmra.mrb[0].mxu0 %v2074
    %v2142 = vpop.f32.mrb[0].mxu0
    %v2143 = vadd.f32 %v2072, %v2142
    %v2144 = vpop.f32.mrb[0].mxu0
    %2145 = vdwg.mxu0
    %v2146 = vxor.u32 %v2143, 2147483648
    %v2147 = vmul.f32 %v2146, 1.442695
    %v2148 = vpow.pop %v2147
    %v2149 = vadd.f32 %v2148, 1.0
    %v2150 = vrcp.pop %v2149
    %v2151 = vmul.f32 1.0, %v2150
    %2152 = vst.msk [vmem:[#allocation7] sm:$0x3] %vm1696, %v2151
    // Predicated region
    $region22: #{net_forward.1} parent=1 // pred_check
      _
    $region23: #{net_forward.1} parent=1 // pred_check_branch
      %2154 = sbr.rel (0) target = $region25
    $region24: #{net_forward.1} parent=1 // pred_region
      %s2156 = ssub.s32 32, 32
      %2157 = vsyncadd [#allocation4], %s2156
      %s2159 = sshll.u32 [#allocation7], 4
      %s2160 = int_to_ptr.vmem [resolvable:$true] %s2159
      %2162 = dma.vmem_to_hbm [thread:$0]  %s2160, 32, %s3, [#allocation4]
    $region25: #{net_forward.1} parent=1 // pred_fallthru
      _
    // Predicated region
    $region26: #{net_forward.1} parent=1 // pred_check
      _
    $region27: #{net_forward.1} parent=1 // pred_check_branch
      %2164 = sbr.rel (0) target = $region29
    $region28: #{net_forward.1} parent=1 // pred_region
      %2165 = dma.done [#allocation4], 32
    $region29: #{net_forward.1} parent=1 // pred_fallthru
      _
    %2166 = vsyncpa [#allocation3], 1
    %2167 = vsyncpa [#allocation6], 1
    %2168 = vsyncpa [#allocation4], 1

</llo_original>
